<compile_context>
chip_gen: v6e
topology: v6e:2x2x1
jax: 0.10.0
libtpu: 0.0.40
codegen_flags: <defaults>
</compile_context>

<pallas_src>
import functools

import jax
import jax.numpy as jnp
import numpy as np
from jax import lax
from jax.experimental import pallas as pl
from jax.experimental.pallas import tpu as pltpu


def _round_up(a, b):
    return ((a + b - 1) // b) * b


# --------------------------- FPS kernel -------------------------------------
def _fps_kernel(pts_ref, cent_ref, work_ref, *, N, G, R):
    """Furthest point sampling (seed = index 0) over N points stored as three
    dense (R, 128) coordinate planes stacked into one (3R, 128) ref
    (rows [0,R)=x, [R,2R)=y, [2R,3R)=z; flat point index = row*128 + lane).
    Writes row g of cent_ref = [-2*xg, -2*yg, -2*zg, 1, 0, ...] (MXU-ready)."""
    lane = lax.broadcasted_iota(jnp.int32, (1, 128), 1)
    valid = (lax.broadcasted_iota(jnp.int32, (R, 128), 0) * 128
             + lax.broadcasted_iota(jnp.int32, (R, 128), 1)) < N
    neg_inf = jnp.float32(-jnp.inf)

    cent_ref[...] = jnp.zeros_like(cent_ref)          # padded rows -> zero matmul rows

    def coord(plane, row, ln):                        # scalar coordinate from VMEM planes
        rv = pts_ref[pl.ds(plane * R + row, 1), :]    # (1, 128) dynamic row
        return jnp.sum(jnp.where(lane == ln, rv, jnp.float32(0.0)))

    def pick(g, row, ln):
        """Record center g = point (row, ln); return dense sq-dist to it."""
        cx = coord(0, row, ln)
        cy = coord(1, row, ln)
        cz = coord(2, row, ln)
        crow = jnp.where(lane == 0, -2.0 * cx,
               jnp.where(lane == 1, -2.0 * cy,
               jnp.where(lane == 2, -2.0 * cz,
               jnp.where(lane == 3, jnp.float32(1.0), jnp.float32(0.0)))))
        cent_ref[pl.ds(g, 1), :] = crow
        # Stream the planes here (inside the loop body) so at most one (R,128)
        # plane + the work tile are live at a time (bounded vreg pressure).
        dx = pts_ref[0:R, :] - cx
        d = dx * dx
        dy = pts_ref[R:2 * R, :] - cy
        d = d + dy * dy
        dz = pts_ref[2 * R:3 * R, :] - cz
        d = d + dz * dz
        return d

    # seed: point 0 (pointnet2 furthest_point_sample convention)
    d0 = pick(0, jnp.int32(0), jnp.int32(0))
    work_ref[...] = jnp.where(valid, d0, neg_inf)     # padded slots never win

    def fps_step(g, carry):
        w = work_ref[...]
        # hierarchical argmax: one full cross-lane pass, then a (1,128) search
        rowmax = jnp.max(w, axis=1, keepdims=True)                        # (R, 1)
        mx = jnp.max(rowmax)
        rid = lax.broadcasted_iota(jnp.int32, (R, 1), 0)
        row = jnp.min(jnp.where(rowmax == mx, rid, R)).astype(jnp.int32)  # first row
        wrow = work_ref[pl.ds(row, 1), :]                                 # (1, 128)
        ln = jnp.min(jnp.where(wrow == mx, lane, 128)).astype(jnp.int32)  # first lane
        d = pick(g, row, ln)
        work_ref[...] = jnp.minimum(w, d)                                 # -inf padding kept
        return carry

    lax.fori_loop(1, G, fps_step, 0, unroll=(G <= 16))


# --------------------------- kNN kernel -------------------------------------
def _knn_kernel(planes_ref, cent_ref, idx_ref, *, M, TG, N_pad):
    """M nearest neighbors for a chunk of TG centers over all points.
    planes_ref: (8, N_pad) rows = [x, y, z, |p|^2 (1e30 on padded lanes), 0,0,0,0].
    cent_ref:   (TG, 128)  lanes = [-2x, -2y, -2z, 1, 0, ...] (zeros for padded rows).
    idx_ref:    (TG, 128)  lane m (< M) holds the index of the m-th neighbor."""
    lane_n = lax.broadcasted_iota(jnp.int32, (TG, N_pad), 1)
    lane_m = lax.broadcasted_iota(jnp.int32, (TG, 128), 1)
    big_i = jnp.int32(N_pad)
    inf = jnp.float32(jnp.inf)

    # distance rank |p|^2 - 2 c.p (== |p-c|^2 - |c|^2): one tiny-K MXU matmul;
    # padded point lanes carry |p|^2 = 1e30 so they can never win the argmin.
    cent8 = cent_ref[:, 0:8]                                    # (TG, 8)
    d = jnp.dot(cent8, planes_ref[...], preferred_element_type=jnp.float32)

    acc = jnp.zeros((TG, 128), jnp.int32)
    for m in range(M):                                          # M small & static
        mn = jnp.min(d, axis=1, keepdims=True)                  # (TG, 1)
        idx = jnp.min(jnp.where(d == mn, lane_n, big_i),
                      axis=1, keepdims=True).astype(jnp.int32)  # first-index ties
        acc = jnp.where(lane_m == m, idx, acc)                  # lane m := pick m
        d = jnp.where(lane_n == idx, inf, d)                    # exclude picked point
    idx_ref[...] = acc                                          # one lane-dense store


# --------------------------- wrapper -----------------------------------------
def group_forward(xyz, num_group, group_size):
    """Pallas equivalent of Group(num_group, group_size).forward(xyz)."""
    B, N, _ = xyz.shape
    assert B == 1, "fps() in the reference module asserts batch size 1"
    G, M = num_group, group_size
    assert M <= 128, "group_size is packed into the 128 lanes of the index tile"

    R = _round_up(pl.cdiv(N, 128), 8)          # dense plane rows
    N_pad = R * 128
    G_pad = _round_up(G, 8)

    # kNN chunking: >= 2 chunks when possible (lets v7x megacore split the
    # "parallel" axis); otherwise keep chunks big.  Cap the chunk so the
    # (TG, N_pad) distance working set stays register/VMEM friendly.
    if G_pad <= 8:
        TG = G_pad
    else:
        TG = min(_round_up(pl.cdiv(G_pad, 2), 8), 128)
    n_chunks = pl.cdiv(G_pad, TG)
    G_pad2 = n_chunks * TG

    x0 = xyz[0].astype(jnp.float32)                               # (N, 3)
    planes = jnp.zeros((3, N_pad), jnp.float32).at[:, :N].set(x0.T)
    pts_fps = planes.reshape(3 * R, 128)                          # stacked x/y/z rows

    # kNN point block: [x; y; z; |p|^2; 0;0;0;0]; padded lanes get |p|^2 = 1e30.
    sq = jnp.sum(planes * planes, axis=0, keepdims=True)
    sq = jnp.where((jnp.arange(N_pad) < N)[None, :], sq, jnp.float32(1e30))
    planes_knn = jnp.concatenate(
        [planes, sq, jnp.zeros((4, N_pad), jnp.float32)], axis=0)  # (8, N_pad)

    # ---- FPS: emit MXU-ready center rows directly ----------------------------
    cent = pl.pallas_call(
        functools.partial(_fps_kernel, N=N, G=G, R=R),
        grid=(1,),
        in_specs=[pl.BlockSpec((3 * R, 128), lambda i: (0, 0))],
        out_specs=pl.BlockSpec((G_pad2, 128), lambda i: (0, 0)),
        out_shape=jax.ShapeDtypeStruct((G_pad2, 128), jnp.float32),
        scratch_shapes=[pltpu.VMEM((R, 128), jnp.float32)],        # running min-dist
        compiler_params=pltpu.CompilerParams(
            dimension_semantics=("arbitrary",),
            vmem_limit_bytes=32 * 1024 * 1024),
    )(pts_fps)

    center = cent[:G, :3] * jnp.float32(-0.5)          # exact: (-2x) * (-0.5) = x

    # ---- kNN: MXU distance rank, grid-parallel over chunks of centers --------
    neigh_idx = pl.pallas_call(
        functools.partial(_knn_kernel, M=M, TG=TG, N_pad=N_pad),
        grid=(n_chunks,),
        in_specs=[
            pl.BlockSpec((8, N_pad), lambda i: (0, 0)),
            pl.BlockSpec((TG, 128), lambda i: (i, 0)),
        ],
        out_specs=pl.BlockSpec((TG, 128), lambda i: (i, 0)),
        out_shape=jax.ShapeDtypeStruct((G_pad2, 128), jnp.int32),
        compiler_params=pltpu.CompilerParams(
            dimension_semantics=("parallel",),
            vmem_limit_bytes=32 * 1024 * 1024),
    )(planes_knn, cent)

    idx = neigh_idx[:G, :M]
    neighborhood = jnp.take(x0, idx.reshape(-1), axis=0).reshape(1, G, M, 3)
    return neighborhood, center[None]


# --------------------------- NumPy reference & checks ------------------------
def _fps_ref(xyz_np, G):
    x = np.asarray(xyz_np[0], np.float32)
    d = ((x[:, None, :] - x[None, :, :]) ** 2).sum(-1)
    sel = [0]
    work = d[0].copy()
    for _ in range(1, G):
        nxt = int(np.argmax(work))
        sel.append(nxt)
        work = np.minimum(work, d[nxt])
    return x[np.asarray(sel)]


def _check(xyz_np, neighborhood, center, G, M):
    x = np.asarray(xyz_np[0], np.float32)
    ct = np.asarray(center[0], np.float32)
    nb = np.asarray(neighborhood[0], np.float32)
    # centers: exact FPS semantics (seed index 0), strict comparison
    assert np.allclose(ct, _fps_ref(xyz_np, G), atol=1e-5), "FPS center mismatch"
    # neighborhood: each center must receive exactly its M smallest distances,
    # in non-decreasing order (robust to near-tie permutations of the f32 rank).
    for g in range(G):
        d_ref = np.sort(((x - ct[g]) ** 2).sum(-1))[:M]
        d_got = ((nb[g] - ct[g]) ** 2).sum(-1)
        assert np.all(np.diff(d_got) >= -1e-5), f"kNN order broken (center {g})"
        assert np.allclose(np.sort(d_got), d_ref, rtol=1e-4, atol=1e-5), \
            f"kNN top-{M} mismatch (center {g})"


if __name__ == "__main__":
    key = jax.random.PRNGKey(0)
    # (N, G, M): small base case, odd-N padding path, multi-chunk kNN grid path.
    for cfg_i, (N, G, M) in enumerate([(128, 8, 4), (100, 8, 6), (300, 12, 8)]):
        k = key if cfg_i == 0 else jax.random.fold_in(key, cfg_i)
        xyz = jax.random.uniform(k, (1, N, 3), dtype=jnp.float32)

        neighborhood, center = group_forward(xyz, G, M)
        jax.block_until_ready((neighborhood, center))

        assert neighborhood.shape == (1, G, M, 3) and center.shape == (1, G, 3)
        _check(np.asarray(xyz), neighborhood, center, G, M)

    print("KERNEL_OK")
</pallas_src>

<mosaic_0001>
module attributes {stable_mosaic.version = 11 : i64} {
  func.func @_fps_kernel(%arg0: i32, %arg1: memref<24x128xf32, #tpu.memory_space<vmem>>, %arg2: memref<8x128xf32, #tpu.memory_space<vmem>>, %arg3: memref<8x128xf32, #tpu.memory_space<vmem>>) attributes {dimension_semantics = [#tpu.dimension_semantics<arbitrary>], iteration_bounds = array<i64: 1>, scalar_prefetch = 0 : i64, scratch_operands = 1 : i64, tpu.core_type = #tpu.core_type<tc>, window_params = [{pipeline_mode = #tpu.pipeline_mode<synchronous>, transform_indices = @transform_0, window_bounds = array<i64: 24, 128>}, {pipeline_mode = #tpu.pipeline_mode<synchronous>, transform_indices = @transform_1, window_bounds = array<i64: 8, 128>}]} {
    %0 = tpu.iota {dimensions = array<i32: 1>} : vector<1x128xi32>
    %1 = tpu.iota {dimensions = array<i32: 0>} : vector<8x128xi32>
    %c128_i32 = arith.constant 128 : i32
    %2 = vector.broadcast %c128_i32 : i32 to vector<8x128xi32>
    %3 = arith.muli %1, %2 : vector<8x128xi32>
    %4 = tpu.iota {dimensions = array<i32: 1>} : vector<8x128xi32>
    %5 = arith.addi %3, %4 : vector<8x128xi32>
    %c128_i32_0 = arith.constant 128 : i32
    %6 = vector.broadcast %c128_i32_0 : i32 to vector<8x128xi32>
    %7 = arith.cmpi slt, %5, %6 : vector<8x128xi32>
    %cst = arith.constant 0.000000e+00 : f32
    %8 = vector.broadcast %cst : f32 to vector<8x128xf32>
    %c0 = arith.constant 0 : index
    %c0_1 = arith.constant 0 : index
    %9 = vector.load %arg2[%c0, %c0_1] : memref<8x128xf32, #tpu.memory_space<vmem>>, vector<8x128xf32>
    tpu.vector_store %arg2[%c0, %c0_1], %8 {strides = array<i32>} : memref<8x128xf32, #tpu.memory_space<vmem>>, vector<8x128xf32>,
    %c0_i32 = arith.constant 0 : i32
    %c0_i32_2 = arith.constant 0 : i32
    %10 = arith.addi %c0_i32, %c0_i32_2 : i32
    %11 = arith.index_cast %10 : i32 to index
    %c0_3 = arith.constant 0 : index
    %12 = vector.load %arg1[%11, %c0_3] : memref<24x128xf32, #tpu.memory_space<vmem>>, vector<1x128xf32>
    %c0_i32_4 = arith.constant 0 : i32
    %13 = vector.broadcast %c0_i32_4 : i32 to vector<1x128xi32>
    %14 = arith.cmpi eq, %0, %13 : vector<1x128xi32>
    %cst_5 = arith.constant 0.000000e+00 : f32
    %15 = vector.broadcast %cst_5 : f32 to vector<1x128xf32>
    %16 = arith.select %14, %12, %15 : vector<1x128xi1>, vector<1x128xf32>
    %17 = vector.shape_cast %16 : vector<1x128xf32> to vector<1x1x128xf32>
    %cst_6 = arith.constant dense<0.000000e+00> : vector<1xf32>
    %18 = vector.multi_reduction <add>, %17, %cst_6 [1, 2] : vector<1x1x128xf32> to vector<1xf32>
    %19 = vector.shape_cast %18 : vector<1xf32> to vector<1x1x1xf32>
    %20 = vector.extract %19[0, 0, 0] : f32 from vector<1x1x1xf32>
    %c8_i32 = arith.constant 8 : i32
    %c0_i32_7 = arith.constant 0 : i32
    %21 = arith.addi %c8_i32, %c0_i32_7 : i32
    %22 = arith.index_cast %21 : i32 to index
    %c0_8 = arith.constant 0 : index
    %23 = vector.load %arg1[%22, %c0_8] : memref<24x128xf32, #tpu.memory_space<vmem>>, vector<1x128xf32>
    %c0_i32_9 = arith.constant 0 : i32
    %24 = vector.broadcast %c0_i32_9 : i32 to vector<1x128xi32>
    %25 = arith.cmpi eq, %0, %24 : vector<1x128xi32>
    %cst_10 = arith.constant 0.000000e+00 : f32
    %26 = vector.broadcast %cst_10 : f32 to vector<1x128xf32>
    %27 = arith.select %25, %23, %26 : vector<1x128xi1>, vector<1x128xf32>
    %28 = vector.shape_cast %27 : vector<1x128xf32> to vector<1x1x128xf32>
    %cst_11 = arith.constant dense<0.000000e+00> : vector<1xf32>
    %29 = vector.multi_reduction <add>, %28, %cst_11 [1, 2] : vector<1x1x128xf32> to vector<1xf32>
    %30 = vector.shape_cast %29 : vector<1xf32> to vector<1x1x1xf32>
    %31 = vector.extract %30[0, 0, 0] : f32 from vector<1x1x1xf32>
    %c16_i32 = arith.constant 16 : i32
    %c0_i32_12 = arith.constant 0 : i32
    %32 = arith.addi %c16_i32, %c0_i32_12 : i32
    %33 = arith.index_cast %32 : i32 to index
    %c0_13 = arith.constant 0 : index
    %34 = vector.load %arg1[%33, %c0_13] : memref<24x128xf32, #tpu.memory_space<vmem>>, vector<1x128xf32>
    %c0_i32_14 = arith.constant 0 : i32
    %35 = vector.broadcast %c0_i32_14 : i32 to vector<1x128xi32>
    %36 = arith.cmpi eq, %0, %35 : vector<1x128xi32>
    %cst_15 = arith.constant 0.000000e+00 : f32
    %37 = vector.broadcast %cst_15 : f32 to vector<1x128xf32>
    %38 = arith.select %36, %34, %37 : vector<1x128xi1>, vector<1x128xf32>
    %39 = vector.shape_cast %38 : vector<1x128xf32> to vector<1x1x128xf32>
    %cst_16 = arith.constant dense<0.000000e+00> : vector<1xf32>
    %40 = vector.multi_reduction <add>, %39, %cst_16 [1, 2] : vector<1x1x128xf32> to vector<1xf32>
    %41 = vector.shape_cast %40 : vector<1xf32> to vector<1x1x1xf32>
    %42 = vector.extract %41[0, 0, 0] : f32 from vector<1x1x1xf32>
    %c0_i32_17 = arith.constant 0 : i32
    %43 = vector.broadcast %c0_i32_17 : i32 to vector<1x128xi32>
    %44 = arith.cmpi eq, %0, %43 : vector<1x128xi32>
    %cst_18 = arith.constant -2.000000e+00 : f32
    %45 = arith.mulf %cst_18, %20 : f32
    %c1_i32 = arith.constant 1 : i32
    %46 = vector.broadcast %c1_i32 : i32 to vector<1x128xi32>
    %47 = arith.cmpi eq, %0, %46 : vector<1x128xi32>
    %cst_19 = arith.constant -2.000000e+00 : f32
    %48 = arith.mulf %cst_19, %31 : f32
    %c2_i32 = arith.constant 2 : i32
    %49 = vector.broadcast %c2_i32 : i32 to vector<1x128xi32>
    %50 = arith.cmpi eq, %0, %49 : vector<1x128xi32>
    %cst_20 = arith.constant -2.000000e+00 : f32
    %51 = arith.mulf %cst_20, %42 : f32
    %c3_i32 = arith.constant 3 : i32
    %52 = vector.broadcast %c3_i32 : i32 to vector<1x128xi32>
    %53 = arith.cmpi eq, %0, %52 : vector<1x128xi32>
    %cst_21 = arith.constant 1.000000e+00 : f32
    %cst_22 = arith.constant 0.000000e+00 : f32
    %54 = vector.broadcast %cst_21 : f32 to vector<1x128xf32>
    %55 = vector.broadcast %cst_22 : f32 to vector<1x128xf32>
    %56 = arith.select %53, %54, %55 : vector<1x128xi1>, vector<1x128xf32>
    %57 = vector.broadcast %51 : f32 to vector<1x128xf32>
    %58 = arith.select %50, %57, %56 : vector<1x128xi1>, vector<1x128xf32>
    %59 = vector.broadcast %48 : f32 to vector<1x128xf32>
    %60 = arith.select %47, %59, %58 : vector<1x128xi1>, vector<1x128xf32>
    %61 = vector.broadcast %45 : f32 to vector<1x128xf32>
    %62 = arith.select %44, %61, %60 : vector<1x128xi1>, vector<1x128xf32>
    %c0_23 = arith.constant 0 : index
    %c0_24 = arith.constant 0 : index
    %63 = vector.load %arg2[%c0_23, %c0_24] : memref<8x128xf32, #tpu.memory_space<vmem>>, vector<1x128xf32>
    tpu.vector_store %arg2[%c0_23, %c0_24], %62 {strides = array<i32>} : memref<8x128xf32, #tpu.memory_space<vmem>>, vector<1x128xf32>,
    %c0_25 = arith.constant 0 : index
    %c0_26 = arith.constant 0 : index
    %64 = vector.load %arg1[%c0_25, %c0_26] : memref<24x128xf32, #tpu.memory_space<vmem>>, vector<8x128xf32>
    %65 = vector.broadcast %20 : f32 to vector<8x128xf32>
    %66 = arith.subf %64, %65 : vector<8x128xf32>
    %67 = arith.mulf %66, %66 : vector<8x128xf32>
    %c8 = arith.constant 8 : index
    %c0_27 = arith.constant 0 : index
    %68 = vector.load %arg1[%c8, %c0_27] : memref<24x128xf32, #tpu.memory_space<vmem>>, vector<8x128xf32>
    %69 = vector.broadcast %31 : f32 to vector<8x128xf32>
    %70 = arith.subf %68, %69 : vector<8x128xf32>
    %71 = arith.mulf %70, %70 : vector<8x128xf32>
    %72 = arith.addf %67, %71 : vector<8x128xf32>
    %c16 = arith.constant 16 : index
    %c0_28 = arith.constant 0 : index
    %73 = vector.load %arg1[%c16, %c0_28] : memref<24x128xf32, #tpu.memory_space<vmem>>, vector<8x128xf32>
    %74 = vector.broadcast %42 : f32 to vector<8x128xf32>
    %75 = arith.subf %73, %74 : vector<8x128xf32>
    %76 = arith.mulf %75, %75 : vector<8x128xf32>
    %77 = arith.addf %72, %76 : vector<8x128xf32>
    %cst_29 = arith.constant 0xFF800000 : f32
    %78 = vector.broadcast %cst_29 : f32 to vector<8x128xf32>
    %79 = arith.select %7, %77, %78 : vector<8x128xi1>, vector<8x128xf32>
    %c0_30 = arith.constant 0 : index
    %c0_31 = arith.constant 0 : index
    %80 = vector.load %arg3[%c0_30, %c0_31] : memref<8x128xf32, #tpu.memory_space<vmem>>, vector<8x128xf32>
    tpu.vector_store %arg3[%c0_30, %c0_31], %79 {strides = array<i32>} : memref<8x128xf32, #tpu.memory_space<vmem>>, vector<8x128xf32>,
    %c1_i32_32 = arith.constant 1 : i32
    %c0_33 = arith.constant 0 : index
    %c0_34 = arith.constant 0 : index
    %81 = vector.load %arg3[%c0_33, %c0_34] : memref<8x128xf32, #tpu.memory_space<vmem>>, vector<8x128xf32>
    %cst_35 = arith.constant dense<0xFF800000> : vector<8xf32>
    %82 = vector.multi_reduction <maximumf>, %81, %cst_35 [1] : vector<8x128xf32> to vector<8xf32>
    %83 = vector.shape_cast %82 : vector<8xf32> to vector<8x1xf32>
    %84 = vector.shape_cast %83 : vector<8x1xf32> to vector<1x8x1xf32>
    %cst_36 = arith.constant dense<0xFF800000> : vector<1xf32>
    %85 = vector.multi_reduction <maximumf>, %84, %cst_36 [1, 2] : vector<1x8x1xf32> to vector<1xf32>
    %86 = vector.shape_cast %85 : vector<1xf32> to vector<1x1x1xf32>
    %87 = vector.extract %86[0, 0, 0] : f32 from vector<1x1x1xf32>
    %88 = tpu.iota {dimensions = array<i32: 0>} : vector<8x1xi32>
    %89 = vector.broadcast %87 : f32 to vector<8x1xf32>
    %90 = arith.cmpf oeq, %83, %89 : vector<8x1xf32>
    %c8_i32_37 = arith.constant 8 : i32
    %91 = vector.broadcast %c8_i32_37 : i32 to vector<8x1xi32>
    %92 = arith.select %90, %88, %91 : vector<8x1xi1>, vector<8x1xi32>
    %93 = vector.shape_cast %92 : vector<8x1xi32> to vector<1x8x1xi32>
    %cst_38 = arith.constant dense<2147483647> : vector<1xi32>
    %94 = vector.multi_reduction <minsi>, %93, %cst_38 [1, 2] : vector<1x8x1xi32> to vector<1xi32>
    %95 = vector.shape_cast %94 : vector<1xi32> to vector<1x1x1xi32>
    %96 = vector.extract %95[0, 0, 0] : i32 from vector<1x1x1xi32>
    %97 = arith.index_cast %96 : i32 to index
    %c0_39 = arith.constant 0 : index
    %98 = vector.load %arg3[%97, %c0_39] : memref<8x128xf32, #tpu.memory_space<vmem>>, vector<1x128xf32>
    %99 = vector.broadcast %87 : f32 to vector<1x128xf32>
    %100 = arith.cmpf oeq, %98, %99 : vector<1x128xf32>
    %c128_i32_40 = arith.constant 128 : i32
    %101 = vector.broadcast %c128_i32_40 : i32 to vector<1x128xi32>
    %102 = arith.select %100, %0, %101 : vector<1x128xi1>, vector<1x128xi32>
    %103 = vector.shape_cast %102 : vector<1x128xi32> to vector<1x1x128xi32>
    %cst_41 = arith.constant dense<2147483647> : vector<1xi32>
    %104 = vector.multi_reduction <minsi>, %103, %cst_41 [1, 2] : vector<1x1x128xi32> to vector<1xi32>
    %105 = vector.shape_cast %104 : vector<1xi32> to vector<1x1x1xi32>
    %106 = vector.extract %105[0, 0, 0] : i32 from vector<1x1x1xi32>
    %c0_i32_42 = arith.constant 0 : i32
    %107 = arith.addi %c0_i32_42, %96 : i32
    %108 = arith.index_cast %107 : i32 to index
    %c0_43 = arith.constant 0 : index
    %109 = vector.load %arg1[%108, %c0_43] : memref<24x128xf32, #tpu.memory_space<vmem>>, vector<1x128xf32>
    %110 = vector.broadcast %106 : i32 to vector<1x128xi32>
    %111 = arith.cmpi eq, %0, %110 : vector<1x128xi32>
    %cst_44 = arith.constant 0.000000e+00 : f32
    %112 = vector.broadcast %cst_44 : f32 to vector<1x128xf32>
    %113 = arith.select %111, %109, %112 : vector<1x128xi1>, vector<1x128xf32>
    %114 = vector.shape_cast %113 : vector<1x128xf32> to vector<1x1x128xf32>
    %cst_45 = arith.constant dense<0.000000e+00> : vector<1xf32>
    %115 = vector.multi_reduction <add>, %114, %cst_45 [1, 2] : vector<1x1x128xf32> to vector<1xf32>
    %116 = vector.shape_cast %115 : vector<1xf32> to vector<1x1x1xf32>
    %117 = vector.extract %116[0, 0, 0] : f32 from vector<1x1x1xf32>
    %c8_i32_46 = arith.constant 8 : i32
    %118 = arith.addi %c8_i32_46, %96 : i32
    %119 = arith.index_cast %118 : i32 to index
    %c0_47 = arith.constant 0 : index
    %120 = vector.load %arg1[%119, %c0_47] : memref<24x128xf32, #tpu.memory_space<vmem>>, vector<1x128xf32>
    %121 = vector.broadcast %106 : i32 to vector<1x128xi32>
    %122 = arith.cmpi eq, %0, %121 : vector<1x128xi32>
    %cst_48 = arith.constant 0.000000e+00 : f32
    %123 = vector.broadcast %cst_48 : f32 to vector<1x128xf32>
    %124 = arith.select %122, %120, %123 : vector<1x128xi1>, vector<1x128xf32>
    %125 = vector.shape_cast %124 : vector<1x128xf32> to vector<1x1x128xf32>
    %cst_49 = arith.constant dense<0.000000e+00> : vector<1xf32>
    %126 = vector.multi_reduction <add>, %125, %cst_49 [1, 2] : vector<1x1x128xf32> to vector<1xf32>
    %127 = vector.shape_cast %126 : vector<1xf32> to vector<1x1x1xf32>
    %128 = vector.extract %127[0, 0, 0] : f32 from vector<1x1x1xf32>
    %c16_i32_50 = arith.constant 16 : i32
    %129 = arith.addi %c16_i32_50, %96 : i32
    %130 = arith.index_cast %129 : i32 to index
    %c0_51 = arith.constant 0 : index
    %131 = vector.load %arg1[%130, %c0_51] : memref<24x128xf32, #tpu.memory_space<vmem>>, vector<1x128xf32>
    %132 = vector.broadcast %106 : i32 to vector<1x128xi32>
    %133 = arith.cmpi eq, %0, %132 : vector<1x128xi32>
    %cst_52 = arith.constant 0.000000e+00 : f32
    %134 = vector.broadcast %cst_52 : f32 to vector<1x128xf32>
    %135 = arith.select %133, %131, %134 : vector<1x128xi1>, vector<1x128xf32>
    %136 = vector.shape_cast %135 : vector<1x128xf32> to vector<1x1x128xf32>
    %cst_53 = arith.constant dense<0.000000e+00> : vector<1xf32>
    %137 = vector.multi_reduction <add>, %136, %cst_53 [1, 2] : vector<1x1x128xf32> to vector<1xf32>
    %138 = vector.shape_cast %137 : vector<1xf32> to vector<1x1x1xf32>
    %139 = vector.extract %138[0, 0, 0] : f32 from vector<1x1x1xf32>
    %c0_i32_54 = arith.constant 0 : i32
    %140 = vector.broadcast %c0_i32_54 : i32 to vector<1x128xi32>
    %141 = arith.cmpi eq, %0, %140 : vector<1x128xi32>
    %cst_55 = arith.constant -2.000000e+00 : f32
    %142 = arith.mulf %cst_55, %117 : f32
    %c1_i32_56 = arith.constant 1 : i32
    %143 = vector.broadcast %c1_i32_56 : i32 to vector<1x128xi32>
    %144 = arith.cmpi eq, %0, %143 : vector<1x128xi32>
    %cst_57 = arith.constant -2.000000e+00 : f32
    %145 = arith.mulf %cst_57, %128 : f32
    %c2_i32_58 = arith.constant 2 : i32
    %146 = vector.broadcast %c2_i32_58 : i32 to vector<1x128xi32>
    %147 = arith.cmpi eq, %0, %146 : vector<1x128xi32>
    %cst_59 = arith.constant -2.000000e+00 : f32
    %148 = arith.mulf %cst_59, %139 : f32
    %c3_i32_60 = arith.constant 3 : i32
    %149 = vector.broadcast %c3_i32_60 : i32 to vector<1x128xi32>
    %150 = arith.cmpi eq, %0, %149 : vector<1x128xi32>
    %cst_61 = arith.constant 1.000000e+00 : f32
    %cst_62 = arith.constant 0.000000e+00 : f32
    %151 = vector.broadcast %cst_61 : f32 to vector<1x128xf32>
    %152 = vector.broadcast %cst_62 : f32 to vector<1x128xf32>
    %153 = arith.select %150, %151, %152 : vector<1x128xi1>, vector<1x128xf32>
    %154 = vector.broadcast %148 : f32 to vector<1x128xf32>
    %155 = arith.select %147, %154, %153 : vector<1x128xi1>, vector<1x128xf32>
    %156 = vector.broadcast %145 : f32 to vector<1x128xf32>
    %157 = arith.select %144, %156, %155 : vector<1x128xi1>, vector<1x128xf32>
    %158 = vector.broadcast %142 : f32 to vector<1x128xf32>
    %159 = arith.select %141, %158, %157 : vector<1x128xi1>, vector<1x128xf32>
    %160 = arith.index_cast %c1_i32_32 : i32 to index
    %c0_63 = arith.constant 0 : index
    %161 = vector.load %arg2[%160, %c0_63] : memref<8x128xf32, #tpu.memory_space<vmem>>, vector<1x128xf32>
    tpu.vector_store %arg2[%160, %c0_63], %159 {strides = array<i32>} : memref<8x128xf32, #tpu.memory_space<vmem>>, vector<1x128xf32>,
    %c0_64 = arith.constant 0 : index
    %c0_65 = arith.constant 0 : index
    %162 = vector.load %arg1[%c0_64, %c0_65] : memref<24x128xf32, #tpu.memory_space<vmem>>, vector<8x128xf32>
    %163 = vector.broadcast %117 : f32 to vector<8x128xf32>
    %164 = arith.subf %162, %163 : vector<8x128xf32>
    %165 = arith.mulf %164, %164 : vector<8x128xf32>
    %c8_66 = arith.constant 8 : index
    %c0_67 = arith.constant 0 : index
    %166 = vector.load %arg1[%c8_66, %c0_67] : memref<24x128xf32, #tpu.memory_space<vmem>>, vector<8x128xf32>
    %167 = vector.broadcast %128 : f32 to vector<8x128xf32>
    %168 = arith.subf %166, %167 : vector<8x128xf32>
    %169 = arith.mulf %168, %168 : vector<8x128xf32>
    %170 = arith.addf %165, %169 : vector<8x128xf32>
    %c16_68 = arith.constant 16 : index
    %c0_69 = arith.constant 0 : index
    %171 = vector.load %arg1[%c16_68, %c0_69] : memref<24x128xf32, #tpu.memory_space<vmem>>, vector<8x128xf32>
    %172 = vector.broadcast %139 : f32 to vector<8x128xf32>
    %173 = arith.subf %171, %172 : vector<8x128xf32>
    %174 = arith.mulf %173, %173 : vector<8x128xf32>
    %175 = arith.addf %170, %174 : vector<8x128xf32>
    %176 = arith.minimumf %81, %175 : vector<8x128xf32>
    %c0_70 = arith.constant 0 : index
    %c0_71 = arith.constant 0 : index
    %177 = vector.load %arg3[%c0_70, %c0_71] : memref<8x128xf32, #tpu.memory_space<vmem>>, vector<8x128xf32>
    tpu.vector_store %arg3[%c0_70, %c0_71], %176 {strides = array<i32>} : memref<8x128xf32, #tpu.memory_space<vmem>>, vector<8x128xf32>,
    %c2_i32_72 = arith.constant 2 : i32
    %c0_73 = arith.constant 0 : index
    %c0_74 = arith.constant 0 : index
    %178 = vector.load %arg3[%c0_73, %c0_74] : memref<8x128xf32, #tpu.memory_space<vmem>>, vector<8x128xf32>
    %cst_75 = arith.constant dense<0xFF800000> : vector<8xf32>
    %179 = vector.multi_reduction <maximumf>, %178, %cst_75 [1] : vector<8x128xf32> to vector<8xf32>
    %180 = vector.shape_cast %179 : vector<8xf32> to vector<8x1xf32>
    %181 = vector.shape_cast %180 : vector<8x1xf32> to vector<1x8x1xf32>
    %cst_76 = arith.constant dense<0xFF800000> : vector<1xf32>
    %182 = vector.multi_reduction <maximumf>, %181, %cst_76 [1, 2] : vector<1x8x1xf32> to vector<1xf32>
    %183 = vector.shape_cast %182 : vector<1xf32> to vector<1x1x1xf32>
    %184 = vector.extract %183[0, 0, 0] : f32 from vector<1x1x1xf32>
    %185 = tpu.iota {dimensions = array<i32: 0>} : vector<8x1xi32>
    %186 = vector.broadcast %184 : f32 to vector<8x1xf32>
    %187 = arith.cmpf oeq, %180, %186 : vector<8x1xf32>
    %c8_i32_77 = arith.constant 8 : i32
    %188 = vector.broadcast %c8_i32_77 : i32 to vector<8x1xi32>
    %189 = arith.select %187, %185, %188 : vector<8x1xi1>, vector<8x1xi32>
    %190 = vector.shape_cast %189 : vector<8x1xi32> to vector<1x8x1xi32>
    %cst_78 = arith.constant dense<2147483647> : vector<1xi32>
    %191 = vector.multi_reduction <minsi>, %190, %cst_78 [1, 2] : vector<1x8x1xi32> to vector<1xi32>
    %192 = vector.shape_cast %191 : vector<1xi32> to vector<1x1x1xi32>
    %193 = vector.extract %192[0, 0, 0] : i32 from vector<1x1x1xi32>
    %194 = arith.index_cast %193 : i32 to index
    %c0_79 = arith.constant 0 : index
    %195 = vector.load %arg3[%194, %c0_79] : memref<8x128xf32, #tpu.memory_space<vmem>>, vector<1x128xf32>
    %196 = vector.broadcast %184 : f32 to vector<1x128xf32>
    %197 = arith.cmpf oeq, %195, %196 : vector<1x128xf32>
    %c128_i32_80 = arith.constant 128 : i32
    %198 = vector.broadcast %c128_i32_80 : i32 to vector<1x128xi32>
    %199 = arith.select %197, %0, %198 : vector<1x128xi1>, vector<1x128xi32>
    %200 = vector.shape_cast %199 : vector<1x128xi32> to vector<1x1x128xi32>
    %cst_81 = arith.constant dense<2147483647> : vector<1xi32>
    %201 = vector.multi_reduction <minsi>, %200, %cst_81 [1, 2] : vector<1x1x128xi32> to vector<1xi32>
    %202 = vector.shape_cast %201 : vector<1xi32> to vector<1x1x1xi32>
    %203 = vector.extract %202[0, 0, 0] : i32 from vector<1x1x1xi32>
    %c0_i32_82 = arith.constant 0 : i32
    %204 = arith.addi %c0_i32_82, %193 : i32
    %205 = arith.index_cast %204 : i32 to index
    %c0_83 = arith.constant 0 : index
    %206 = vector.load %arg1[%205, %c0_83] : memref<24x128xf32, #tpu.memory_space<vmem>>, vector<1x128xf32>
    %207 = vector.broadcast %203 : i32 to vector<1x128xi32>
    %208 = arith.cmpi eq, %0, %207 : vector<1x128xi32>
    %cst_84 = arith.constant 0.000000e+00 : f32
    %209 = vector.broadcast %cst_84 : f32 to vector<1x128xf32>
    %210 = arith.select %208, %206, %209 : vector<1x128xi1>, vector<1x128xf32>
    %211 = vector.shape_cast %210 : vector<1x128xf32> to vector<1x1x128xf32>
    %cst_85 = arith.constant dense<0.000000e+00> : vector<1xf32>
    %212 = vector.multi_reduction <add>, %211, %cst_85 [1, 2] : vector<1x1x128xf32> to vector<1xf32>
    %213 = vector.shape_cast %212 : vector<1xf32> to vector<1x1x1xf32>
    %214 = vector.extract %213[0, 0, 0] : f32 from vector<1x1x1xf32>
    %c8_i32_86 = arith.constant 8 : i32
    %215 = arith.addi %c8_i32_86, %193 : i32
    %216 = arith.index_cast %215 : i32 to index
    %c0_87 = arith.constant 0 : index
    %217 = vector.load %arg1[%216, %c0_87] : memref<24x128xf32, #tpu.memory_space<vmem>>, vector<1x128xf32>
    %218 = vector.broadcast %203 : i32 to vector<1x128xi32>
    %219 = arith.cmpi eq, %0, %218 : vector<1x128xi32>
    %cst_88 = arith.constant 0.000000e+00 : f32
    %220 = vector.broadcast %cst_88 : f32 to vector<1x128xf32>
    %221 = arith.select %219, %217, %220 : vector<1x128xi1>, vector<1x128xf32>
    %222 = vector.shape_cast %221 : vector<1x128xf32> to vector<1x1x128xf32>
    %cst_89 = arith.constant dense<0.000000e+00> : vector<1xf32>
    %223 = vector.multi_reduction <add>, %222, %cst_89 [1, 2] : vector<1x1x128xf32> to vector<1xf32>
    %224 = vector.shape_cast %223 : vector<1xf32> to vector<1x1x1xf32>
    %225 = vector.extract %224[0, 0, 0] : f32 from vector<1x1x1xf32>
    %c16_i32_90 = arith.constant 16 : i32
    %226 = arith.addi %c16_i32_90, %193 : i32
    %227 = arith.index_cast %226 : i32 to index
    %c0_91 = arith.constant 0 : index
    %228 = vector.load %arg1[%227, %c0_91] : memref<24x128xf32, #tpu.memory_space<vmem>>, vector<1x128xf32>
    %229 = vector.broadcast %203 : i32 to vector<1x128xi32>
    %230 = arith.cmpi eq, %0, %229 : vector<1x128xi32>
    %cst_92 = arith.constant 0.000000e+00 : f32
    %231 = vector.broadcast %cst_92 : f32 to vector<1x128xf32>
    %232 = arith.select %230, %228, %231 : vector<1x128xi1>, vector<1x128xf32>
    %233 = vector.shape_cast %232 : vector<1x128xf32> to vector<1x1x128xf32>
    %cst_93 = arith.constant dense<0.000000e+00> : vector<1xf32>
    %234 = vector.multi_reduction <add>, %233, %cst_93 [1, 2] : vector<1x1x128xf32> to vector<1xf32>
    %235 = vector.shape_cast %234 : vector<1xf32> to vector<1x1x1xf32>
    %236 = vector.extract %235[0, 0, 0] : f32 from vector<1x1x1xf32>
    %c0_i32_94 = arith.constant 0 : i32
    %237 = vector.broadcast %c0_i32_94 : i32 to vector<1x128xi32>
    %238 = arith.cmpi eq, %0, %237 : vector<1x128xi32>
    %cst_95 = arith.constant -2.000000e+00 : f32
    %239 = arith.mulf %cst_95, %214 : f32
    %c1_i32_96 = arith.constant 1 : i32
    %240 = vector.broadcast %c1_i32_96 : i32 to vector<1x128xi32>
    %241 = arith.cmpi eq, %0, %240 : vector<1x128xi32>
    %cst_97 = arith.constant -2.000000e+00 : f32
    %242 = arith.mulf %cst_97, %225 : f32
    %c2_i32_98 = arith.constant 2 : i32
    %243 = vector.broadcast %c2_i32_98 : i32 to vector<1x128xi32>
    %244 = arith.cmpi eq, %0, %243 : vector<1x128xi32>
    %cst_99 = arith.constant -2.000000e+00 : f32
    %245 = arith.mulf %cst_99, %236 : f32
    %c3_i32_100 = arith.constant 3 : i32
    %246 = vector.broadcast %c3_i32_100 : i32 to vector<1x128xi32>
    %247 = arith.cmpi eq, %0, %246 : vector<1x128xi32>
    %cst_101 = arith.constant 1.000000e+00 : f32
    %cst_102 = arith.constant 0.000000e+00 : f32
    %248 = vector.broadcast %cst_101 : f32 to vector<1x128xf32>
    %249 = vector.broadcast %cst_102 : f32 to vector<1x128xf32>
    %250 = arith.select %247, %248, %249 : vector<1x128xi1>, vector<1x128xf32>
    %251 = vector.broadcast %245 : f32 to vector<1x128xf32>
    %252 = arith.select %244, %251, %250 : vector<1x128xi1>, vector<1x128xf32>
    %253 = vector.broadcast %242 : f32 to vector<1x128xf32>
    %254 = arith.select %241, %253, %252 : vector<1x128xi1>, vector<1x128xf32>
    %255 = vector.broadcast %239 : f32 to vector<1x128xf32>
    %256 = arith.select %238, %255, %254 : vector<1x128xi1>, vector<1x128xf32>
    %257 = arith.index_cast %c2_i32_72 : i32 to index
    %c0_103 = arith.constant 0 : index
    %258 = vector.load %arg2[%257, %c0_103] : memref<8x128xf32, #tpu.memory_space<vmem>>, vector<1x128xf32>
    tpu.vector_store %arg2[%257, %c0_103], %256 {strides = array<i32>} : memref<8x128xf32, #tpu.memory_space<vmem>>, vector<1x128xf32>,
    %c0_104 = arith.constant 0 : index
    %c0_105 = arith.constant 0 : index
    %259 = vector.load %arg1[%c0_104, %c0_105] : memref<24x128xf32, #tpu.memory_space<vmem>>, vector<8x128xf32>
    %260 = vector.broadcast %214 : f32 to vector<8x128xf32>
    %261 = arith.subf %259, %260 : vector<8x128xf32>
    %262 = arith.mulf %261, %261 : vector<8x128xf32>
    %c8_106 = arith.constant 8 : index
    %c0_107 = arith.constant 0 : index
    %263 = vector.load %arg1[%c8_106, %c0_107] : memref<24x128xf32, #tpu.memory_space<vmem>>, vector<8x128xf32>
    %264 = vector.broadcast %225 : f32 to vector<8x128xf32>
    %265 = arith.subf %263, %264 : vector<8x128xf32>
    %266 = arith.mulf %265, %265 : vector<8x128xf32>
    %267 = arith.addf %262, %266 : vector<8x128xf32>
    %c16_108 = arith.constant 16 : index
    %c0_109 = arith.constant 0 : index
    %268 = vector.load %arg1[%c16_108, %c0_109] : memref<24x128xf32, #tpu.memory_space<vmem>>, vector<8x128xf32>
    %269 = vector.broadcast %236 : f32 to vector<8x128xf32>
    %270 = arith.subf %268, %269 : vector<8x128xf32>
    %271 = arith.mulf %270, %270 : vector<8x128xf32>
    %272 = arith.addf %267, %271 : vector<8x128xf32>
    %273 = arith.minimumf %178, %272 : vector<8x128xf32>
    %c0_110 = arith.constant 0 : index
    %c0_111 = arith.constant 0 : index
    %274 = vector.load %arg3[%c0_110, %c0_111] : memref<8x128xf32, #tpu.memory_space<vmem>>, vector<8x128xf32>
    tpu.vector_store %arg3[%c0_110, %c0_111], %273 {strides = array<i32>} : memref<8x128xf32, #tpu.memory_space<vmem>>, vector<8x128xf32>,
    %c3_i32_112 = arith.constant 3 : i32
    %c0_113 = arith.constant 0 : index
    %c0_114 = arith.constant 0 : index
    %275 = vector.load %arg3[%c0_113, %c0_114] : memref<8x128xf32, #tpu.memory_space<vmem>>, vector<8x128xf32>
    %cst_115 = arith.constant dense<0xFF800000> : vector<8xf32>
    %276 = vector.multi_reduction <maximumf>, %275, %cst_115 [1] : vector<8x128xf32> to vector<8xf32>
    %277 = vector.shape_cast %276 : vector<8xf32> to vector<8x1xf32>
    %278 = vector.shape_cast %277 : vector<8x1xf32> to vector<1x8x1xf32>
    %cst_116 = arith.constant dense<0xFF800000> : vector<1xf32>
    %279 = vector.multi_reduction <maximumf>, %278, %cst_116 [1, 2] : vector<1x8x1xf32> to vector<1xf32>
    %280 = vector.shape_cast %279 : vector<1xf32> to vector<1x1x1xf32>
    %281 = vector.extract %280[0, 0, 0] : f32 from vector<1x1x1xf32>
    %282 = tpu.iota {dimensions = array<i32: 0>} : vector<8x1xi32>
    %283 = vector.broadcast %281 : f32 to vector<8x1xf32>
    %284 = arith.cmpf oeq, %277, %283 : vector<8x1xf32>
    %c8_i32_117 = arith.constant 8 : i32
    %285 = vector.broadcast %c8_i32_117 : i32 to vector<8x1xi32>
    %286 = arith.select %284, %282, %285 : vector<8x1xi1>, vector<8x1xi32>
    %287 = vector.shape_cast %286 : vector<8x1xi32> to vector<1x8x1xi32>
    %cst_118 = arith.constant dense<2147483647> : vector<1xi32>
    %288 = vector.multi_reduction <minsi>, %287, %cst_118 [1, 2] : vector<1x8x1xi32> to vector<1xi32>
    %289 = vector.shape_cast %288 : vector<1xi32> to vector<1x1x1xi32>
    %290 = vector.extract %289[0, 0, 0] : i32 from vector<1x1x1xi32>
    %291 = arith.index_cast %290 : i32 to index
    %c0_119 = arith.constant 0 : index
    %292 = vector.load %arg3[%291, %c0_119] : memref<8x128xf32, #tpu.memory_space<vmem>>, vector<1x128xf32>
    %293 = vector.broadcast %281 : f32 to vector<1x128xf32>
    %294 = arith.cmpf oeq, %292, %293 : vector<1x128xf32>
    %c128_i32_120 = arith.constant 128 : i32
    %295 = vector.broadcast %c128_i32_120 : i32 to vector<1x128xi32>
    %296 = arith.select %294, %0, %295 : vector<1x128xi1>, vector<1x128xi32>
    %297 = vector.shape_cast %296 : vector<1x128xi32> to vector<1x1x128xi32>
    %cst_121 = arith.constant dense<2147483647> : vector<1xi32>
    %298 = vector.multi_reduction <minsi>, %297, %cst_121 [1, 2] : vector<1x1x128xi32> to vector<1xi32>
    %299 = vector.shape_cast %298 : vector<1xi32> to vector<1x1x1xi32>
    %300 = vector.extract %299[0, 0, 0] : i32 from vector<1x1x1xi32>
    %c0_i32_122 = arith.constant 0 : i32
    %301 = arith.addi %c0_i32_122, %290 : i32
    %302 = arith.index_cast %301 : i32 to index
    %c0_123 = arith.constant 0 : index
    %303 = vector.load %arg1[%302, %c0_123] : memref<24x128xf32, #tpu.memory_space<vmem>>, vector<1x128xf32>
    %304 = vector.broadcast %300 : i32 to vector<1x128xi32>
    %305 = arith.cmpi eq, %0, %304 : vector<1x128xi32>
    %cst_124 = arith.constant 0.000000e+00 : f32
    %306 = vector.broadcast %cst_124 : f32 to vector<1x128xf32>
    %307 = arith.select %305, %303, %306 : vector<1x128xi1>, vector<1x128xf32>
    %308 = vector.shape_cast %307 : vector<1x128xf32> to vector<1x1x128xf32>
    %cst_125 = arith.constant dense<0.000000e+00> : vector<1xf32>
    %309 = vector.multi_reduction <add>, %308, %cst_125 [1, 2] : vector<1x1x128xf32> to vector<1xf32>
    %310 = vector.shape_cast %309 : vector<1xf32> to vector<1x1x1xf32>
    %311 = vector.extract %310[0, 0, 0] : f32 from vector<1x1x1xf32>
    %c8_i32_126 = arith.constant 8 : i32
    %312 = arith.addi %c8_i32_126, %290 : i32
    %313 = arith.index_cast %312 : i32 to index
    %c0_127 = arith.constant 0 : index
    %314 = vector.load %arg1[%313, %c0_127] : memref<24x128xf32, #tpu.memory_space<vmem>>, vector<1x128xf32>
    %315 = vector.broadcast %300 : i32 to vector<1x128xi32>
    %316 = arith.cmpi eq, %0, %315 : vector<1x128xi32>
    %cst_128 = arith.constant 0.000000e+00 : f32
    %317 = vector.broadcast %cst_128 : f32 to vector<1x128xf32>
    %318 = arith.select %316, %314, %317 : vector<1x128xi1>, vector<1x128xf32>
    %319 = vector.shape_cast %318 : vector<1x128xf32> to vector<1x1x128xf32>
    %cst_129 = arith.constant dense<0.000000e+00> : vector<1xf32>
    %320 = vector.multi_reduction <add>, %319, %cst_129 [1, 2] : vector<1x1x128xf32> to vector<1xf32>
    %321 = vector.shape_cast %320 : vector<1xf32> to vector<1x1x1xf32>
    %322 = vector.extract %321[0, 0, 0] : f32 from vector<1x1x1xf32>
    %c16_i32_130 = arith.constant 16 : i32
    %323 = arith.addi %c16_i32_130, %290 : i32
    %324 = arith.index_cast %323 : i32 to index
    %c0_131 = arith.constant 0 : index
    %325 = vector.load %arg1[%324, %c0_131] : memref<24x128xf32, #tpu.memory_space<vmem>>, vector<1x128xf32>
    %326 = vector.broadcast %300 : i32 to vector<1x128xi32>
    %327 = arith.cmpi eq, %0, %326 : vector<1x128xi32>
    %cst_132 = arith.constant 0.000000e+00 : f32
    %328 = vector.broadcast %cst_132 : f32 to vector<1x128xf32>
    %329 = arith.select %327, %325, %328 : vector<1x128xi1>, vector<1x128xf32>
    %330 = vector.shape_cast %329 : vector<1x128xf32> to vector<1x1x128xf32>
    %cst_133 = arith.constant dense<0.000000e+00> : vector<1xf32>
    %331 = vector.multi_reduction <add>, %330, %cst_133 [1, 2] : vector<1x1x128xf32> to vector<1xf32>
    %332 = vector.shape_cast %331 : vector<1xf32> to vector<1x1x1xf32>
    %333 = vector.extract %332[0, 0, 0] : f32 from vector<1x1x1xf32>
    %c0_i32_134 = arith.constant 0 : i32
    %334 = vector.broadcast %c0_i32_134 : i32 to vector<1x128xi32>
    %335 = arith.cmpi eq, %0, %334 : vector<1x128xi32>
    %cst_135 = arith.constant -2.000000e+00 : f32
    %336 = arith.mulf %cst_135, %311 : f32
    %c1_i32_136 = arith.constant 1 : i32
    %337 = vector.broadcast %c1_i32_136 : i32 to vector<1x128xi32>
    %338 = arith.cmpi eq, %0, %337 : vector<1x128xi32>
    %cst_137 = arith.constant -2.000000e+00 : f32
    %339 = arith.mulf %cst_137, %322 : f32
    %c2_i32_138 = arith.constant 2 : i32
    %340 = vector.broadcast %c2_i32_138 : i32 to vector<1x128xi32>
    %341 = arith.cmpi eq, %0, %340 : vector<1x128xi32>
    %cst_139 = arith.constant -2.000000e+00 : f32
    %342 = arith.mulf %cst_139, %333 : f32
    %c3_i32_140 = arith.constant 3 : i32
    %343 = vector.broadcast %c3_i32_140 : i32 to vector<1x128xi32>
    %344 = arith.cmpi eq, %0, %343 : vector<1x128xi32>
    %cst_141 = arith.constant 1.000000e+00 : f32
    %cst_142 = arith.constant 0.000000e+00 : f32
    %345 = vector.broadcast %cst_141 : f32 to vector<1x128xf32>
    %346 = vector.broadcast %cst_142 : f32 to vector<1x128xf32>
    %347 = arith.select %344, %345, %346 : vector<1x128xi1>, vector<1x128xf32>
    %348 = vector.broadcast %342 : f32 to vector<1x128xf32>
    %349 = arith.select %341, %348, %347 : vector<1x128xi1>, vector<1x128xf32>
    %350 = vector.broadcast %339 : f32 to vector<1x128xf32>
    %351 = arith.select %338, %350, %349 : vector<1x128xi1>, vector<1x128xf32>
    %352 = vector.broadcast %336 : f32 to vector<1x128xf32>
    %353 = arith.select %335, %352, %351 : vector<1x128xi1>, vector<1x128xf32>
    %354 = arith.index_cast %c3_i32_112 : i32 to index
    %c0_143 = arith.constant 0 : index
    %355 = vector.load %arg2[%354, %c0_143] : memref<8x128xf32, #tpu.memory_space<vmem>>, vector<1x128xf32>
    tpu.vector_store %arg2[%354, %c0_143], %353 {strides = array<i32>} : memref<8x128xf32, #tpu.memory_space<vmem>>, vector<1x128xf32>,
    %c0_144 = arith.constant 0 : index
    %c0_145 = arith.constant 0 : index
    %356 = vector.load %arg1[%c0_144, %c0_145] : memref<24x128xf32, #tpu.memory_space<vmem>>, vector<8x128xf32>
    %357 = vector.broadcast %311 : f32 to vector<8x128xf32>
    %358 = arith.subf %356, %357 : vector<8x128xf32>
    %359 = arith.mulf %358, %358 : vector<8x128xf32>
    %c8_146 = arith.constant 8 : index
    %c0_147 = arith.constant 0 : index
    %360 = vector.load %arg1[%c8_146, %c0_147] : memref<24x128xf32, #tpu.memory_space<vmem>>, vector<8x128xf32>
    %361 = vector.broadcast %322 : f32 to vector<8x128xf32>
    %362 = arith.subf %360, %361 : vector<8x128xf32>
    %363 = arith.mulf %362, %362 : vector<8x128xf32>
    %364 = arith.addf %359, %363 : vector<8x128xf32>
    %c16_148 = arith.constant 16 : index
    %c0_149 = arith.constant 0 : index
    %365 = vector.load %arg1[%c16_148, %c0_149] : memref<24x128xf32, #tpu.memory_space<vmem>>, vector<8x128xf32>
    %366 = vector.broadcast %333 : f32 to vector<8x128xf32>
    %367 = arith.subf %365, %366 : vector<8x128xf32>
    %368 = arith.mulf %367, %367 : vector<8x128xf32>
    %369 = arith.addf %364, %368 : vector<8x128xf32>
    %370 = arith.minimumf %275, %369 : vector<8x128xf32>
    %c0_150 = arith.constant 0 : index
    %c0_151 = arith.constant 0 : index
    %371 = vector.load %arg3[%c0_150, %c0_151] : memref<8x128xf32, #tpu.memory_space<vmem>>, vector<8x128xf32>
    tpu.vector_store %arg3[%c0_150, %c0_151], %370 {strides = array<i32>} : memref<8x128xf32, #tpu.memory_space<vmem>>, vector<8x128xf32>,
    %c4_i32 = arith.constant 4 : i32
    %c0_152 = arith.constant 0 : index
    %c0_153 = arith.constant 0 : index
    %372 = vector.load %arg3[%c0_152, %c0_153] : memref<8x128xf32, #tpu.memory_space<vmem>>, vector<8x128xf32>
    %cst_154 = arith.constant dense<0xFF800000> : vector<8xf32>
    %373 = vector.multi_reduction <maximumf>, %372, %cst_154 [1] : vector<8x128xf32> to vector<8xf32>
    %374 = vector.shape_cast %373 : vector<8xf32> to vector<8x1xf32>
    %375 = vector.shape_cast %374 : vector<8x1xf32> to vector<1x8x1xf32>
    %cst_155 = arith.constant dense<0xFF800000> : vector<1xf32>
    %376 = vector.multi_reduction <maximumf>, %375, %cst_155 [1, 2] : vector<1x8x1xf32> to vector<1xf32>
    %377 = vector.shape_cast %376 : vector<1xf32> to vector<1x1x1xf32>
    %378 = vector.extract %377[0, 0, 0] : f32 from vector<1x1x1xf32>
    %379 = tpu.iota {dimensions = array<i32: 0>} : vector<8x1xi32>
    %380 = vector.broadcast %378 : f32 to vector<8x1xf32>
    %381 = arith.cmpf oeq, %374, %380 : vector<8x1xf32>
    %c8_i32_156 = arith.constant 8 : i32
    %382 = vector.broadcast %c8_i32_156 : i32 to vector<8x1xi32>
    %383 = arith.select %381, %379, %382 : vector<8x1xi1>, vector<8x1xi32>
    %384 = vector.shape_cast %383 : vector<8x1xi32> to vector<1x8x1xi32>
    %cst_157 = arith.constant dense<2147483647> : vector<1xi32>
    %385 = vector.multi_reduction <minsi>, %384, %cst_157 [1, 2] : vector<1x8x1xi32> to vector<1xi32>
    %386 = vector.shape_cast %385 : vector<1xi32> to vector<1x1x1xi32>
    %387 = vector.extract %386[0, 0, 0] : i32 from vector<1x1x1xi32>
    %388 = arith.index_cast %387 : i32 to index
    %c0_158 = arith.constant 0 : index
    %389 = vector.load %arg3[%388, %c0_158] : memref<8x128xf32, #tpu.memory_space<vmem>>, vector<1x128xf32>
    %390 = vector.broadcast %378 : f32 to vector<1x128xf32>
    %391 = arith.cmpf oeq, %389, %390 : vector<1x128xf32>
    %c128_i32_159 = arith.constant 128 : i32
    %392 = vector.broadcast %c128_i32_159 : i32 to vector<1x128xi32>
    %393 = arith.select %391, %0, %392 : vector<1x128xi1>, vector<1x128xi32>
    %394 = vector.shape_cast %393 : vector<1x128xi32> to vector<1x1x128xi32>
    %cst_160 = arith.constant dense<2147483647> : vector<1xi32>
    %395 = vector.multi_reduction <minsi>, %394, %cst_160 [1, 2] : vector<1x1x128xi32> to vector<1xi32>
    %396 = vector.shape_cast %395 : vector<1xi32> to vector<1x1x1xi32>
    %397 = vector.extract %396[0, 0, 0] : i32 from vector<1x1x1xi32>
    %c0_i32_161 = arith.constant 0 : i32
    %398 = arith.addi %c0_i32_161, %387 : i32
    %399 = arith.index_cast %398 : i32 to index
    %c0_162 = arith.constant 0 : index
    %400 = vector.load %arg1[%399, %c0_162] : memref<24x128xf32, #tpu.memory_space<vmem>>, vector<1x128xf32>
    %401 = vector.broadcast %397 : i32 to vector<1x128xi32>
    %402 = arith.cmpi eq, %0, %401 : vector<1x128xi32>
    %cst_163 = arith.constant 0.000000e+00 : f32
    %403 = vector.broadcast %cst_163 : f32 to vector<1x128xf32>
    %404 = arith.select %402, %400, %403 : vector<1x128xi1>, vector<1x128xf32>
    %405 = vector.shape_cast %404 : vector<1x128xf32> to vector<1x1x128xf32>
    %cst_164 = arith.constant dense<0.000000e+00> : vector<1xf32>
    %406 = vector.multi_reduction <add>, %405, %cst_164 [1, 2] : vector<1x1x128xf32> to vector<1xf32>
    %407 = vector.shape_cast %406 : vector<1xf32> to vector<1x1x1xf32>
    %408 = vector.extract %407[0, 0, 0] : f32 from vector<1x1x1xf32>
    %c8_i32_165 = arith.constant 8 : i32
    %409 = arith.addi %c8_i32_165, %387 : i32
    %410 = arith.index_cast %409 : i32 to index
    %c0_166 = arith.constant 0 : index
    %411 = vector.load %arg1[%410, %c0_166] : memref<24x128xf32, #tpu.memory_space<vmem>>, vector<1x128xf32>
    %412 = vector.broadcast %397 : i32 to vector<1x128xi32>
    %413 = arith.cmpi eq, %0, %412 : vector<1x128xi32>
    %cst_167 = arith.constant 0.000000e+00 : f32
    %414 = vector.broadcast %cst_167 : f32 to vector<1x128xf32>
    %415 = arith.select %413, %411, %414 : vector<1x128xi1>, vector<1x128xf32>
    %416 = vector.shape_cast %415 : vector<1x128xf32> to vector<1x1x128xf32>
    %cst_168 = arith.constant dense<0.000000e+00> : vector<1xf32>
    %417 = vector.multi_reduction <add>, %416, %cst_168 [1, 2] : vector<1x1x128xf32> to vector<1xf32>
    %418 = vector.shape_cast %417 : vector<1xf32> to vector<1x1x1xf32>
    %419 = vector.extract %418[0, 0, 0] : f32 from vector<1x1x1xf32>
    %c16_i32_169 = arith.constant 16 : i32
    %420 = arith.addi %c16_i32_169, %387 : i32
    %421 = arith.index_cast %420 : i32 to index
    %c0_170 = arith.constant 0 : index
    %422 = vector.load %arg1[%421, %c0_170] : memref<24x128xf32, #tpu.memory_space<vmem>>, vector<1x128xf32>
    %423 = vector.broadcast %397 : i32 to vector<1x128xi32>
    %424 = arith.cmpi eq, %0, %423 : vector<1x128xi32>
    %cst_171 = arith.constant 0.000000e+00 : f32
    %425 = vector.broadcast %cst_171 : f32 to vector<1x128xf32>
    %426 = arith.select %424, %422, %425 : vector<1x128xi1>, vector<1x128xf32>
    %427 = vector.shape_cast %426 : vector<1x128xf32> to vector<1x1x128xf32>
    %cst_172 = arith.constant dense<0.000000e+00> : vector<1xf32>
    %428 = vector.multi_reduction <add>, %427, %cst_172 [1, 2] : vector<1x1x128xf32> to vector<1xf32>
    %429 = vector.shape_cast %428 : vector<1xf32> to vector<1x1x1xf32>
    %430 = vector.extract %429[0, 0, 0] : f32 from vector<1x1x1xf32>
    %c0_i32_173 = arith.constant 0 : i32
    %431 = vector.broadcast %c0_i32_173 : i32 to vector<1x128xi32>
    %432 = arith.cmpi eq, %0, %431 : vector<1x128xi32>
    %cst_174 = arith.constant -2.000000e+00 : f32
    %433 = arith.mulf %cst_174, %408 : f32
    %c1_i32_175 = arith.constant 1 : i32
    %434 = vector.broadcast %c1_i32_175 : i32 to vector<1x128xi32>
    %435 = arith.cmpi eq, %0, %434 : vector<1x128xi32>
    %cst_176 = arith.constant -2.000000e+00 : f32
    %436 = arith.mulf %cst_176, %419 : f32
    %c2_i32_177 = arith.constant 2 : i32
    %437 = vector.broadcast %c2_i32_177 : i32 to vector<1x128xi32>
    %438 = arith.cmpi eq, %0, %437 : vector<1x128xi32>
    %cst_178 = arith.constant -2.000000e+00 : f32
    %439 = arith.mulf %cst_178, %430 : f32
    %c3_i32_179 = arith.constant 3 : i32
    %440 = vector.broadcast %c3_i32_179 : i32 to vector<1x128xi32>
    %441 = arith.cmpi eq, %0, %440 : vector<1x128xi32>
    %cst_180 = arith.constant 1.000000e+00 : f32
    %cst_181 = arith.constant 0.000000e+00 : f32
    %442 = vector.broadcast %cst_180 : f32 to vector<1x128xf32>
    %443 = vector.broadcast %cst_181 : f32 to vector<1x128xf32>
    %444 = arith.select %441, %442, %443 : vector<1x128xi1>, vector<1x128xf32>
    %445 = vector.broadcast %439 : f32 to vector<1x128xf32>
    %446 = arith.select %438, %445, %444 : vector<1x128xi1>, vector<1x128xf32>
    %447 = vector.broadcast %436 : f32 to vector<1x128xf32>
    %448 = arith.select %435, %447, %446 : vector<1x128xi1>, vector<1x128xf32>
    %449 = vector.broadcast %433 : f32 to vector<1x128xf32>
    %450 = arith.select %432, %449, %448 : vector<1x128xi1>, vector<1x128xf32>
    %451 = arith.index_cast %c4_i32 : i32 to index
    %c0_182 = arith.constant 0 : index
    %452 = vector.load %arg2[%451, %c0_182] : memref<8x128xf32, #tpu.memory_space<vmem>>, vector<1x128xf32>
    tpu.vector_store %arg2[%451, %c0_182], %450 {strides = array<i32>} : memref<8x128xf32, #tpu.memory_space<vmem>>, vector<1x128xf32>,
    %c0_183 = arith.constant 0 : index
    %c0_184 = arith.constant 0 : index
    %453 = vector.load %arg1[%c0_183, %c0_184] : memref<24x128xf32, #tpu.memory_space<vmem>>, vector<8x128xf32>
    %454 = vector.broadcast %408 : f32 to vector<8x128xf32>
    %455 = arith.subf %453, %454 : vector<8x128xf32>
    %456 = arith.mulf %455, %455 : vector<8x128xf32>
    %c8_185 = arith.constant 8 : index
    %c0_186 = arith.constant 0 : index
    %457 = vector.load %arg1[%c8_185, %c0_186] : memref<24x128xf32, #tpu.memory_space<vmem>>, vector<8x128xf32>
    %458 = vector.broadcast %419 : f32 to vector<8x128xf32>
    %459 = arith.subf %457, %458 : vector<8x128xf32>
    %460 = arith.mulf %459, %459 : vector<8x128xf32>
    %461 = arith.addf %456, %460 : vector<8x128xf32>
    %c16_187 = arith.constant 16 : index
    %c0_188 = arith.constant 0 : index
    %462 = vector.load %arg1[%c16_187, %c0_188] : memref<24x128xf32, #tpu.memory_space<vmem>>, vector<8x128xf32>
    %463 = vector.broadcast %430 : f32 to vector<8x128xf32>
    %464 = arith.subf %462, %463 : vector<8x128xf32>
    %465 = arith.mulf %464, %464 : vector<8x128xf32>
    %466 = arith.addf %461, %465 : vector<8x128xf32>
    %467 = arith.minimumf %372, %466 : vector<8x128xf32>
    %c0_189 = arith.constant 0 : index
    %c0_190 = arith.constant 0 : index
    %468 = vector.load %arg3[%c0_189, %c0_190] : memref<8x128xf32, #tpu.memory_space<vmem>>, vector<8x128xf32>
    tpu.vector_store %arg3[%c0_189, %c0_190], %467 {strides = array<i32>} : memref<8x128xf32, #tpu.memory_space<vmem>>, vector<8x128xf32>,
    %c5_i32 = arith.constant 5 : i32
    %c0_191 = arith.constant 0 : index
    %c0_192 = arith.constant 0 : index
    %469 = vector.load %arg3[%c0_191, %c0_192] : memref<8x128xf32, #tpu.memory_space<vmem>>, vector<8x128xf32>
    %cst_193 = arith.constant dense<0xFF800000> : vector<8xf32>
    %470 = vector.multi_reduction <maximumf>, %469, %cst_193 [1] : vector<8x128xf32> to vector<8xf32>
    %471 = vector.shape_cast %470 : vector<8xf32> to vector<8x1xf32>
    %472 = vector.shape_cast %471 : vector<8x1xf32> to vector<1x8x1xf32>
    %cst_194 = arith.constant dense<0xFF800000> : vector<1xf32>
    %473 = vector.multi_reduction <maximumf>, %472, %cst_194 [1, 2] : vector<1x8x1xf32> to vector<1xf32>
    %474 = vector.shape_cast %473 : vector<1xf32> to vector<1x1x1xf32>
    %475 = vector.extract %474[0, 0, 0] : f32 from vector<1x1x1xf32>
    %476 = tpu.iota {dimensions = array<i32: 0>} : vector<8x1xi32>
    %477 = vector.broadcast %475 : f32 to vector<8x1xf32>
    %478 = arith.cmpf oeq, %471, %477 : vector<8x1xf32>
    %c8_i32_195 = arith.constant 8 : i32
    %479 = vector.broadcast %c8_i32_195 : i32 to vector<8x1xi32>
    %480 = arith.select %478, %476, %479 : vector<8x1xi1>, vector<8x1xi32>
    %481 = vector.shape_cast %480 : vector<8x1xi32> to vector<1x8x1xi32>
    %cst_196 = arith.constant dense<2147483647> : vector<1xi32>
    %482 = vector.multi_reduction <minsi>, %481, %cst_196 [1, 2] : vector<1x8x1xi32> to vector<1xi32>
    %483 = vector.shape_cast %482 : vector<1xi32> to vector<1x1x1xi32>
    %484 = vector.extract %483[0, 0, 0] : i32 from vector<1x1x1xi32>
    %485 = arith.index_cast %484 : i32 to index
    %c0_197 = arith.constant 0 : index
    %486 = vector.load %arg3[%485, %c0_197] : memref<8x128xf32, #tpu.memory_space<vmem>>, vector<1x128xf32>
    %487 = vector.broadcast %475 : f32 to vector<1x128xf32>
    %488 = arith.cmpf oeq, %486, %487 : vector<1x128xf32>
    %c128_i32_198 = arith.constant 128 : i32
    %489 = vector.broadcast %c128_i32_198 : i32 to vector<1x128xi32>
    %490 = arith.select %488, %0, %489 : vector<1x128xi1>, vector<1x128xi32>
    %491 = vector.shape_cast %490 : vector<1x128xi32> to vector<1x1x128xi32>
    %cst_199 = arith.constant dense<2147483647> : vector<1xi32>
    %492 = vector.multi_reduction <minsi>, %491, %cst_199 [1, 2] : vector<1x1x128xi32> to vector<1xi32>
    %493 = vector.shape_cast %492 : vector<1xi32> to vector<1x1x1xi32>
    %494 = vector.extract %493[0, 0, 0] : i32 from vector<1x1x1xi32>
    %c0_i32_200 = arith.constant 0 : i32
    %495 = arith.addi %c0_i32_200, %484 : i32
    %496 = arith.index_cast %495 : i32 to index
    %c0_201 = arith.constant 0 : index
    %497 = vector.load %arg1[%496, %c0_201] : memref<24x128xf32, #tpu.memory_space<vmem>>, vector<1x128xf32>
    %498 = vector.broadcast %494 : i32 to vector<1x128xi32>
    %499 = arith.cmpi eq, %0, %498 : vector<1x128xi32>
    %cst_202 = arith.constant 0.000000e+00 : f32
    %500 = vector.broadcast %cst_202 : f32 to vector<1x128xf32>
    %501 = arith.select %499, %497, %500 : vector<1x128xi1>, vector<1x128xf32>
    %502 = vector.shape_cast %501 : vector<1x128xf32> to vector<1x1x128xf32>
    %cst_203 = arith.constant dense<0.000000e+00> : vector<1xf32>
    %503 = vector.multi_reduction <add>, %502, %cst_203 [1, 2] : vector<1x1x128xf32> to vector<1xf32>
    %504 = vector.shape_cast %503 : vector<1xf32> to vector<1x1x1xf32>
    %505 = vector.extract %504[0, 0, 0] : f32 from vector<1x1x1xf32>
    %c8_i32_204 = arith.constant 8 : i32
    %506 = arith.addi %c8_i32_204, %484 : i32
    %507 = arith.index_cast %506 : i32 to index
    %c0_205 = arith.constant 0 : index
    %508 = vector.load %arg1[%507, %c0_205] : memref<24x128xf32, #tpu.memory_space<vmem>>, vector<1x128xf32>
    %509 = vector.broadcast %494 : i32 to vector<1x128xi32>
    %510 = arith.cmpi eq, %0, %509 : vector<1x128xi32>
    %cst_206 = arith.constant 0.000000e+00 : f32
    %511 = vector.broadcast %cst_206 : f32 to vector<1x128xf32>
    %512 = arith.select %510, %508, %511 : vector<1x128xi1>, vector<1x128xf32>
    %513 = vector.shape_cast %512 : vector<1x128xf32> to vector<1x1x128xf32>
    %cst_207 = arith.constant dense<0.000000e+00> : vector<1xf32>
    %514 = vector.multi_reduction <add>, %513, %cst_207 [1, 2] : vector<1x1x128xf32> to vector<1xf32>
    %515 = vector.shape_cast %514 : vector<1xf32> to vector<1x1x1xf32>
    %516 = vector.extract %515[0, 0, 0] : f32 from vector<1x1x1xf32>
    %c16_i32_208 = arith.constant 16 : i32
    %517 = arith.addi %c16_i32_208, %484 : i32
    %518 = arith.index_cast %517 : i32 to index
    %c0_209 = arith.constant 0 : index
    %519 = vector.load %arg1[%518, %c0_209] : memref<24x128xf32, #tpu.memory_space<vmem>>, vector<1x128xf32>
    %520 = vector.broadcast %494 : i32 to vector<1x128xi32>
    %521 = arith.cmpi eq, %0, %520 : vector<1x128xi32>
    %cst_210 = arith.constant 0.000000e+00 : f32
    %522 = vector.broadcast %cst_210 : f32 to vector<1x128xf32>
    %523 = arith.select %521, %519, %522 : vector<1x128xi1>, vector<1x128xf32>
    %524 = vector.shape_cast %523 : vector<1x128xf32> to vector<1x1x128xf32>
    %cst_211 = arith.constant dense<0.000000e+00> : vector<1xf32>
    %525 = vector.multi_reduction <add>, %524, %cst_211 [1, 2] : vector<1x1x128xf32> to vector<1xf32>
    %526 = vector.shape_cast %525 : vector<1xf32> to vector<1x1x1xf32>
    %527 = vector.extract %526[0, 0, 0] : f32 from vector<1x1x1xf32>
    %c0_i32_212 = arith.constant 0 : i32
    %528 = vector.broadcast %c0_i32_212 : i32 to vector<1x128xi32>
    %529 = arith.cmpi eq, %0, %528 : vector<1x128xi32>
    %cst_213 = arith.constant -2.000000e+00 : f32
    %530 = arith.mulf %cst_213, %505 : f32
    %c1_i32_214 = arith.constant 1 : i32
    %531 = vector.broadcast %c1_i32_214 : i32 to vector<1x128xi32>
    %532 = arith.cmpi eq, %0, %531 : vector<1x128xi32>
    %cst_215 = arith.constant -2.000000e+00 : f32
    %533 = arith.mulf %cst_215, %516 : f32
    %c2_i32_216 = arith.constant 2 : i32
    %534 = vector.broadcast %c2_i32_216 : i32 to vector<1x128xi32>
    %535 = arith.cmpi eq, %0, %534 : vector<1x128xi32>
    %cst_217 = arith.constant -2.000000e+00 : f32
    %536 = arith.mulf %cst_217, %527 : f32
    %c3_i32_218 = arith.constant 3 : i32
    %537 = vector.broadcast %c3_i32_218 : i32 to vector<1x128xi32>
    %538 = arith.cmpi eq, %0, %537 : vector<1x128xi32>
    %cst_219 = arith.constant 1.000000e+00 : f32
    %cst_220 = arith.constant 0.000000e+00 : f32
    %539 = vector.broadcast %cst_219 : f32 to vector<1x128xf32>
    %540 = vector.broadcast %cst_220 : f32 to vector<1x128xf32>
    %541 = arith.select %538, %539, %540 : vector<1x128xi1>, vector<1x128xf32>
    %542 = vector.broadcast %536 : f32 to vector<1x128xf32>
    %543 = arith.select %535, %542, %541 : vector<1x128xi1>, vector<1x128xf32>
    %544 = vector.broadcast %533 : f32 to vector<1x128xf32>
    %545 = arith.select %532, %544, %543 : vector<1x128xi1>, vector<1x128xf32>
    %546 = vector.broadcast %530 : f32 to vector<1x128xf32>
    %547 = arith.select %529, %546, %545 : vector<1x128xi1>, vector<1x128xf32>
    %548 = arith.index_cast %c5_i32 : i32 to index
    %c0_221 = arith.constant 0 : index
    %549 = vector.load %arg2[%548, %c0_221] : memref<8x128xf32, #tpu.memory_space<vmem>>, vector<1x128xf32>
    tpu.vector_store %arg2[%548, %c0_221], %547 {strides = array<i32>} : memref<8x128xf32, #tpu.memory_space<vmem>>, vector<1x128xf32>,
    %c0_222 = arith.constant 0 : index
    %c0_223 = arith.constant 0 : index
    %550 = vector.load %arg1[%c0_222, %c0_223] : memref<24x128xf32, #tpu.memory_space<vmem>>, vector<8x128xf32>
    %551 = vector.broadcast %505 : f32 to vector<8x128xf32>
    %552 = arith.subf %550, %551 : vector<8x128xf32>
    %553 = arith.mulf %552, %552 : vector<8x128xf32>
    %c8_224 = arith.constant 8 : index
    %c0_225 = arith.constant 0 : index
    %554 = vector.load %arg1[%c8_224, %c0_225] : memref<24x128xf32, #tpu.memory_space<vmem>>, vector<8x128xf32>
    %555 = vector.broadcast %516 : f32 to vector<8x128xf32>
    %556 = arith.subf %554, %555 : vector<8x128xf32>
    %557 = arith.mulf %556, %556 : vector<8x128xf32>
    %558 = arith.addf %553, %557 : vector<8x128xf32>
    %c16_226 = arith.constant 16 : index
    %c0_227 = arith.constant 0 : index
    %559 = vector.load %arg1[%c16_226, %c0_227] : memref<24x128xf32, #tpu.memory_space<vmem>>, vector<8x128xf32>
    %560 = vector.broadcast %527 : f32 to vector<8x128xf32>
    %561 = arith.subf %559, %560 : vector<8x128xf32>
    %562 = arith.mulf %561, %561 : vector<8x128xf32>
    %563 = arith.addf %558, %562 : vector<8x128xf32>
    %564 = arith.minimumf %469, %563 : vector<8x128xf32>
    %c0_228 = arith.constant 0 : index
    %c0_229 = arith.constant 0 : index
    %565 = vector.load %arg3[%c0_228, %c0_229] : memref<8x128xf32, #tpu.memory_space<vmem>>, vector<8x128xf32>
    tpu.vector_store %arg3[%c0_228, %c0_229], %564 {strides = array<i32>} : memref<8x128xf32, #tpu.memory_space<vmem>>, vector<8x128xf32>,
    %c6_i32 = arith.constant 6 : i32
    %c0_230 = arith.constant 0 : index
    %c0_231 = arith.constant 0 : index
    %566 = vector.load %arg3[%c0_230, %c0_231] : memref<8x128xf32, #tpu.memory_space<vmem>>, vector<8x128xf32>
    %cst_232 = arith.constant dense<0xFF800000> : vector<8xf32>
    %567 = vector.multi_reduction <maximumf>, %566, %cst_232 [1] : vector<8x128xf32> to vector<8xf32>
    %568 = vector.shape_cast %567 : vector<8xf32> to vector<8x1xf32>
    %569 = vector.shape_cast %568 : vector<8x1xf32> to vector<1x8x1xf32>
    %cst_233 = arith.constant dense<0xFF800000> : vector<1xf32>
    %570 = vector.multi_reduction <maximumf>, %569, %cst_233 [1, 2] : vector<1x8x1xf32> to vector<1xf32>
    %571 = vector.shape_cast %570 : vector<1xf32> to vector<1x1x1xf32>
    %572 = vector.extract %571[0, 0, 0] : f32 from vector<1x1x1xf32>
    %573 = tpu.iota {dimensions = array<i32: 0>} : vector<8x1xi32>
    %574 = vector.broadcast %572 : f32 to vector<8x1xf32>
    %575 = arith.cmpf oeq, %568, %574 : vector<8x1xf32>
    %c8_i32_234 = arith.constant 8 : i32
    %576 = vector.broadcast %c8_i32_234 : i32 to vector<8x1xi32>
    %577 = arith.select %575, %573, %576 : vector<8x1xi1>, vector<8x1xi32>
    %578 = vector.shape_cast %577 : vector<8x1xi32> to vector<1x8x1xi32>
    %cst_235 = arith.constant dense<2147483647> : vector<1xi32>
    %579 = vector.multi_reduction <minsi>, %578, %cst_235 [1, 2] : vector<1x8x1xi32> to vector<1xi32>
    %580 = vector.shape_cast %579 : vector<1xi32> to vector<1x1x1xi32>
    %581 = vector.extract %580[0, 0, 0] : i32 from vector<1x1x1xi32>
    %582 = arith.index_cast %581 : i32 to index
    %c0_236 = arith.constant 0 : index
    %583 = vector.load %arg3[%582, %c0_236] : memref<8x128xf32, #tpu.memory_space<vmem>>, vector<1x128xf32>
    %584 = vector.broadcast %572 : f32 to vector<1x128xf32>
    %585 = arith.cmpf oeq, %583, %584 : vector<1x128xf32>
    %c128_i32_237 = arith.constant 128 : i32
    %586 = vector.broadcast %c128_i32_237 : i32 to vector<1x128xi32>
    %587 = arith.select %585, %0, %586 : vector<1x128xi1>, vector<1x128xi32>
    %588 = vector.shape_cast %587 : vector<1x128xi32> to vector<1x1x128xi32>
    %cst_238 = arith.constant dense<2147483647> : vector<1xi32>
    %589 = vector.multi_reduction <minsi>, %588, %cst_238 [1, 2] : vector<1x1x128xi32> to vector<1xi32>
    %590 = vector.shape_cast %589 : vector<1xi32> to vector<1x1x1xi32>
    %591 = vector.extract %590[0, 0, 0] : i32 from vector<1x1x1xi32>
    %c0_i32_239 = arith.constant 0 : i32
    %592 = arith.addi %c0_i32_239, %581 : i32
    %593 = arith.index_cast %592 : i32 to index
    %c0_240 = arith.constant 0 : index
    %594 = vector.load %arg1[%593, %c0_240] : memref<24x128xf32, #tpu.memory_space<vmem>>, vector<1x128xf32>
    %595 = vector.broadcast %591 : i32 to vector<1x128xi32>
    %596 = arith.cmpi eq, %0, %595 : vector<1x128xi32>
    %cst_241 = arith.constant 0.000000e+00 : f32
    %597 = vector.broadcast %cst_241 : f32 to vector<1x128xf32>
    %598 = arith.select %596, %594, %597 : vector<1x128xi1>, vector<1x128xf32>
    %599 = vector.shape_cast %598 : vector<1x128xf32> to vector<1x1x128xf32>
    %cst_242 = arith.constant dense<0.000000e+00> : vector<1xf32>
    %600 = vector.multi_reduction <add>, %599, %cst_242 [1, 2] : vector<1x1x128xf32> to vector<1xf32>
    %601 = vector.shape_cast %600 : vector<1xf32> to vector<1x1x1xf32>
    %602 = vector.extract %601[0, 0, 0] : f32 from vector<1x1x1xf32>
    %c8_i32_243 = arith.constant 8 : i32
    %603 = arith.addi %c8_i32_243, %581 : i32
    %604 = arith.index_cast %603 : i32 to index
    %c0_244 = arith.constant 0 : index
    %605 = vector.load %arg1[%604, %c0_244] : memref<24x128xf32, #tpu.memory_space<vmem>>, vector<1x128xf32>
    %606 = vector.broadcast %591 : i32 to vector<1x128xi32>
    %607 = arith.cmpi eq, %0, %606 : vector<1x128xi32>
    %cst_245 = arith.constant 0.000000e+00 : f32
    %608 = vector.broadcast %cst_245 : f32 to vector<1x128xf32>
    %609 = arith.select %607, %605, %608 : vector<1x128xi1>, vector<1x128xf32>
    %610 = vector.shape_cast %609 : vector<1x128xf32> to vector<1x1x128xf32>
    %cst_246 = arith.constant dense<0.000000e+00> : vector<1xf32>
    %611 = vector.multi_reduction <add>, %610, %cst_246 [1, 2] : vector<1x1x128xf32> to vector<1xf32>
    %612 = vector.shape_cast %611 : vector<1xf32> to vector<1x1x1xf32>
    %613 = vector.extract %612[0, 0, 0] : f32 from vector<1x1x1xf32>
    %c16_i32_247 = arith.constant 16 : i32
    %614 = arith.addi %c16_i32_247, %581 : i32
    %615 = arith.index_cast %614 : i32 to index
    %c0_248 = arith.constant 0 : index
    %616 = vector.load %arg1[%615, %c0_248] : memref<24x128xf32, #tpu.memory_space<vmem>>, vector<1x128xf32>
    %617 = vector.broadcast %591 : i32 to vector<1x128xi32>
    %618 = arith.cmpi eq, %0, %617 : vector<1x128xi32>
    %cst_249 = arith.constant 0.000000e+00 : f32
    %619 = vector.broadcast %cst_249 : f32 to vector<1x128xf32>
    %620 = arith.select %618, %616, %619 : vector<1x128xi1>, vector<1x128xf32>
    %621 = vector.shape_cast %620 : vector<1x128xf32> to vector<1x1x128xf32>
    %cst_250 = arith.constant dense<0.000000e+00> : vector<1xf32>
    %622 = vector.multi_reduction <add>, %621, %cst_250 [1, 2] : vector<1x1x128xf32> to vector<1xf32>
    %623 = vector.shape_cast %622 : vector<1xf32> to vector<1x1x1xf32>
    %624 = vector.extract %623[0, 0, 0] : f32 from vector<1x1x1xf32>
    %c0_i32_251 = arith.constant 0 : i32
    %625 = vector.broadcast %c0_i32_251 : i32 to vector<1x128xi32>
    %626 = arith.cmpi eq, %0, %625 : vector<1x128xi32>
    %cst_252 = arith.constant -2.000000e+00 : f32
    %627 = arith.mulf %cst_252, %602 : f32
    %c1_i32_253 = arith.constant 1 : i32
    %628 = vector.broadcast %c1_i32_253 : i32 to vector<1x128xi32>
    %629 = arith.cmpi eq, %0, %628 : vector<1x128xi32>
    %cst_254 = arith.constant -2.000000e+00 : f32
    %630 = arith.mulf %cst_254, %613 : f32
    %c2_i32_255 = arith.constant 2 : i32
    %631 = vector.broadcast %c2_i32_255 : i32 to vector<1x128xi32>
    %632 = arith.cmpi eq, %0, %631 : vector<1x128xi32>
    %cst_256 = arith.constant -2.000000e+00 : f32
    %633 = arith.mulf %cst_256, %624 : f32
    %c3_i32_257 = arith.constant 3 : i32
    %634 = vector.broadcast %c3_i32_257 : i32 to vector<1x128xi32>
    %635 = arith.cmpi eq, %0, %634 : vector<1x128xi32>
    %cst_258 = arith.constant 1.000000e+00 : f32
    %cst_259 = arith.constant 0.000000e+00 : f32
    %636 = vector.broadcast %cst_258 : f32 to vector<1x128xf32>
    %637 = vector.broadcast %cst_259 : f32 to vector<1x128xf32>
    %638 = arith.select %635, %636, %637 : vector<1x128xi1>, vector<1x128xf32>
    %639 = vector.broadcast %633 : f32 to vector<1x128xf32>
    %640 = arith.select %632, %639, %638 : vector<1x128xi1>, vector<1x128xf32>
    %641 = vector.broadcast %630 : f32 to vector<1x128xf32>
    %642 = arith.select %629, %641, %640 : vector<1x128xi1>, vector<1x128xf32>
    %643 = vector.broadcast %627 : f32 to vector<1x128xf32>
    %644 = arith.select %626, %643, %642 : vector<1x128xi1>, vector<1x128xf32>
    %645 = arith.index_cast %c6_i32 : i32 to index
    %c0_260 = arith.constant 0 : index
    %646 = vector.load %arg2[%645, %c0_260] : memref<8x128xf32, #tpu.memory_space<vmem>>, vector<1x128xf32>
    tpu.vector_store %arg2[%645, %c0_260], %644 {strides = array<i32>} : memref<8x128xf32, #tpu.memory_space<vmem>>, vector<1x128xf32>,
    %c0_261 = arith.constant 0 : index
    %c0_262 = arith.constant 0 : index
    %647 = vector.load %arg1[%c0_261, %c0_262] : memref<24x128xf32, #tpu.memory_space<vmem>>, vector<8x128xf32>
    %648 = vector.broadcast %602 : f32 to vector<8x128xf32>
    %649 = arith.subf %647, %648 : vector<8x128xf32>
    %650 = arith.mulf %649, %649 : vector<8x128xf32>
    %c8_263 = arith.constant 8 : index
    %c0_264 = arith.constant 0 : index
    %651 = vector.load %arg1[%c8_263, %c0_264] : memref<24x128xf32, #tpu.memory_space<vmem>>, vector<8x128xf32>
    %652 = vector.broadcast %613 : f32 to vector<8x128xf32>
    %653 = arith.subf %651, %652 : vector<8x128xf32>
    %654 = arith.mulf %653, %653 : vector<8x128xf32>
    %655 = arith.addf %650, %654 : vector<8x128xf32>
    %c16_265 = arith.constant 16 : index
    %c0_266 = arith.constant 0 : index
    %656 = vector.load %arg1[%c16_265, %c0_266] : memref<24x128xf32, #tpu.memory_space<vmem>>, vector<8x128xf32>
    %657 = vector.broadcast %624 : f32 to vector<8x128xf32>
    %658 = arith.subf %656, %657 : vector<8x128xf32>
    %659 = arith.mulf %658, %658 : vector<8x128xf32>
    %660 = arith.addf %655, %659 : vector<8x128xf32>
    %661 = arith.minimumf %566, %660 : vector<8x128xf32>
    %c0_267 = arith.constant 0 : index
    %c0_268 = arith.constant 0 : index
    %662 = vector.load %arg3[%c0_267, %c0_268] : memref<8x128xf32, #tpu.memory_space<vmem>>, vector<8x128xf32>
    tpu.vector_store %arg3[%c0_267, %c0_268], %661 {strides = array<i32>} : memref<8x128xf32, #tpu.memory_space<vmem>>, vector<8x128xf32>,
    %c7_i32 = arith.constant 7 : i32
    %c0_269 = arith.constant 0 : index
    %c0_270 = arith.constant 0 : index
    %663 = vector.load %arg3[%c0_269, %c0_270] : memref<8x128xf32, #tpu.memory_space<vmem>>, vector<8x128xf32>
    %cst_271 = arith.constant dense<0xFF800000> : vector<8xf32>
    %664 = vector.multi_reduction <maximumf>, %663, %cst_271 [1] : vector<8x128xf32> to vector<8xf32>
    %665 = vector.shape_cast %664 : vector<8xf32> to vector<8x1xf32>
    %666 = vector.shape_cast %665 : vector<8x1xf32> to vector<1x8x1xf32>
    %cst_272 = arith.constant dense<0xFF800000> : vector<1xf32>
    %667 = vector.multi_reduction <maximumf>, %666, %cst_272 [1, 2] : vector<1x8x1xf32> to vector<1xf32>
    %668 = vector.shape_cast %667 : vector<1xf32> to vector<1x1x1xf32>
    %669 = vector.extract %668[0, 0, 0] : f32 from vector<1x1x1xf32>
    %670 = tpu.iota {dimensions = array<i32: 0>} : vector<8x1xi32>
    %671 = vector.broadcast %669 : f32 to vector<8x1xf32>
    %672 = arith.cmpf oeq, %665, %671 : vector<8x1xf32>
    %c8_i32_273 = arith.constant 8 : i32
    %673 = vector.broadcast %c8_i32_273 : i32 to vector<8x1xi32>
    %674 = arith.select %672, %670, %673 : vector<8x1xi1>, vector<8x1xi32>
    %675 = vector.shape_cast %674 : vector<8x1xi32> to vector<1x8x1xi32>
    %cst_274 = arith.constant dense<2147483647> : vector<1xi32>
    %676 = vector.multi_reduction <minsi>, %675, %cst_274 [1, 2] : vector<1x8x1xi32> to vector<1xi32>
    %677 = vector.shape_cast %676 : vector<1xi32> to vector<1x1x1xi32>
    %678 = vector.extract %677[0, 0, 0] : i32 from vector<1x1x1xi32>
    %679 = arith.index_cast %678 : i32 to index
    %c0_275 = arith.constant 0 : index
    %680 = vector.load %arg3[%679, %c0_275] : memref<8x128xf32, #tpu.memory_space<vmem>>, vector<1x128xf32>
    %681 = vector.broadcast %669 : f32 to vector<1x128xf32>
    %682 = arith.cmpf oeq, %680, %681 : vector<1x128xf32>
    %c128_i32_276 = arith.constant 128 : i32
    %683 = vector.broadcast %c128_i32_276 : i32 to vector<1x128xi32>
    %684 = arith.select %682, %0, %683 : vector<1x128xi1>, vector<1x128xi32>
    %685 = vector.shape_cast %684 : vector<1x128xi32> to vector<1x1x128xi32>
    %cst_277 = arith.constant dense<2147483647> : vector<1xi32>
    %686 = vector.multi_reduction <minsi>, %685, %cst_277 [1, 2] : vector<1x1x128xi32> to vector<1xi32>
    %687 = vector.shape_cast %686 : vector<1xi32> to vector<1x1x1xi32>
    %688 = vector.extract %687[0, 0, 0] : i32 from vector<1x1x1xi32>
    %c0_i32_278 = arith.constant 0 : i32
    %689 = arith.addi %c0_i32_278, %678 : i32
    %690 = arith.index_cast %689 : i32 to index
    %c0_279 = arith.constant 0 : index
    %691 = vector.load %arg1[%690, %c0_279] : memref<24x128xf32, #tpu.memory_space<vmem>>, vector<1x128xf32>
    %692 = vector.broadcast %688 : i32 to vector<1x128xi32>
    %693 = arith.cmpi eq, %0, %692 : vector<1x128xi32>
    %cst_280 = arith.constant 0.000000e+00 : f32
    %694 = vector.broadcast %cst_280 : f32 to vector<1x128xf32>
    %695 = arith.select %693, %691, %694 : vector<1x128xi1>, vector<1x128xf32>
    %696 = vector.shape_cast %695 : vector<1x128xf32> to vector<1x1x128xf32>
    %cst_281 = arith.constant dense<0.000000e+00> : vector<1xf32>
    %697 = vector.multi_reduction <add>, %696, %cst_281 [1, 2] : vector<1x1x128xf32> to vector<1xf32>
    %698 = vector.shape_cast %697 : vector<1xf32> to vector<1x1x1xf32>
    %699 = vector.extract %698[0, 0, 0] : f32 from vector<1x1x1xf32>
    %c8_i32_282 = arith.constant 8 : i32
    %700 = arith.addi %c8_i32_282, %678 : i32
    %701 = arith.index_cast %700 : i32 to index
    %c0_283 = arith.constant 0 : index
    %702 = vector.load %arg1[%701, %c0_283] : memref<24x128xf32, #tpu.memory_space<vmem>>, vector<1x128xf32>
    %703 = vector.broadcast %688 : i32 to vector<1x128xi32>
    %704 = arith.cmpi eq, %0, %703 : vector<1x128xi32>
    %cst_284 = arith.constant 0.000000e+00 : f32
    %705 = vector.broadcast %cst_284 : f32 to vector<1x128xf32>
    %706 = arith.select %704, %702, %705 : vector<1x128xi1>, vector<1x128xf32>
    %707 = vector.shape_cast %706 : vector<1x128xf32> to vector<1x1x128xf32>
    %cst_285 = arith.constant dense<0.000000e+00> : vector<1xf32>
    %708 = vector.multi_reduction <add>, %707, %cst_285 [1, 2] : vector<1x1x128xf32> to vector<1xf32>
    %709 = vector.shape_cast %708 : vector<1xf32> to vector<1x1x1xf32>
    %710 = vector.extract %709[0, 0, 0] : f32 from vector<1x1x1xf32>
    %c16_i32_286 = arith.constant 16 : i32
    %711 = arith.addi %c16_i32_286, %678 : i32
    %712 = arith.index_cast %711 : i32 to index
    %c0_287 = arith.constant 0 : index
    %713 = vector.load %arg1[%712, %c0_287] : memref<24x128xf32, #tpu.memory_space<vmem>>, vector<1x128xf32>
    %714 = vector.broadcast %688 : i32 to vector<1x128xi32>
    %715 = arith.cmpi eq, %0, %714 : vector<1x128xi32>
    %cst_288 = arith.constant 0.000000e+00 : f32
    %716 = vector.broadcast %cst_288 : f32 to vector<1x128xf32>
    %717 = arith.select %715, %713, %716 : vector<1x128xi1>, vector<1x128xf32>
    %718 = vector.shape_cast %717 : vector<1x128xf32> to vector<1x1x128xf32>
    %cst_289 = arith.constant dense<0.000000e+00> : vector<1xf32>
    %719 = vector.multi_reduction <add>, %718, %cst_289 [1, 2] : vector<1x1x128xf32> to vector<1xf32>
    %720 = vector.shape_cast %719 : vector<1xf32> to vector<1x1x1xf32>
    %721 = vector.extract %720[0, 0, 0] : f32 from vector<1x1x1xf32>
    %c0_i32_290 = arith.constant 0 : i32
    %722 = vector.broadcast %c0_i32_290 : i32 to vector<1x128xi32>
    %723 = arith.cmpi eq, %0, %722 : vector<1x128xi32>
    %cst_291 = arith.constant -2.000000e+00 : f32
    %724 = arith.mulf %cst_291, %699 : f32
    %c1_i32_292 = arith.constant 1 : i32
    %725 = vector.broadcast %c1_i32_292 : i32 to vector<1x128xi32>
    %726 = arith.cmpi eq, %0, %725 : vector<1x128xi32>
    %cst_293 = arith.constant -2.000000e+00 : f32
    %727 = arith.mulf %cst_293, %710 : f32
    %c2_i32_294 = arith.constant 2 : i32
    %728 = vector.broadcast %c2_i32_294 : i32 to vector<1x128xi32>
    %729 = arith.cmpi eq, %0, %728 : vector<1x128xi32>
    %cst_295 = arith.constant -2.000000e+00 : f32
    %730 = arith.mulf %cst_295, %721 : f32
    %c3_i32_296 = arith.constant 3 : i32
    %731 = vector.broadcast %c3_i32_296 : i32 to vector<1x128xi32>
    %732 = arith.cmpi eq, %0, %731 : vector<1x128xi32>
    %cst_297 = arith.constant 1.000000e+00 : f32
    %cst_298 = arith.constant 0.000000e+00 : f32
    %733 = vector.broadcast %cst_297 : f32 to vector<1x128xf32>
    %734 = vector.broadcast %cst_298 : f32 to vector<1x128xf32>
    %735 = arith.select %732, %733, %734 : vector<1x128xi1>, vector<1x128xf32>
    %736 = vector.broadcast %730 : f32 to vector<1x128xf32>
    %737 = arith.select %729, %736, %735 : vector<1x128xi1>, vector<1x128xf32>
    %738 = vector.broadcast %727 : f32 to vector<1x128xf32>
    %739 = arith.select %726, %738, %737 : vector<1x128xi1>, vector<1x128xf32>
    %740 = vector.broadcast %724 : f32 to vector<1x128xf32>
    %741 = arith.select %723, %740, %739 : vector<1x128xi1>, vector<1x128xf32>
    %742 = arith.index_cast %c7_i32 : i32 to index
    %c0_299 = arith.constant 0 : index
    %743 = vector.load %arg2[%742, %c0_299] : memref<8x128xf32, #tpu.memory_space<vmem>>, vector<1x128xf32>
    tpu.vector_store %arg2[%742, %c0_299], %741 {strides = array<i32>} : memref<8x128xf32, #tpu.memory_space<vmem>>, vector<1x128xf32>,
    %c0_300 = arith.constant 0 : index
    %c0_301 = arith.constant 0 : index
    %744 = vector.load %arg1[%c0_300, %c0_301] : memref<24x128xf32, #tpu.memory_space<vmem>>, vector<8x128xf32>
    %745 = vector.broadcast %699 : f32 to vector<8x128xf32>
    %746 = arith.subf %744, %745 : vector<8x128xf32>
    %747 = arith.mulf %746, %746 : vector<8x128xf32>
    %c8_302 = arith.constant 8 : index
    %c0_303 = arith.constant 0 : index
    %748 = vector.load %arg1[%c8_302, %c0_303] : memref<24x128xf32, #tpu.memory_space<vmem>>, vector<8x128xf32>
    %749 = vector.broadcast %710 : f32 to vector<8x128xf32>
    %750 = arith.subf %748, %749 : vector<8x128xf32>
    %751 = arith.mulf %750, %750 : vector<8x128xf32>
    %752 = arith.addf %747, %751 : vector<8x128xf32>
    %c16_304 = arith.constant 16 : index
    %c0_305 = arith.constant 0 : index
    %753 = vector.load %arg1[%c16_304, %c0_305] : memref<24x128xf32, #tpu.memory_space<vmem>>, vector<8x128xf32>
    %754 = vector.broadcast %721 : f32 to vector<8x128xf32>
    %755 = arith.subf %753, %754 : vector<8x128xf32>
    %756 = arith.mulf %755, %755 : vector<8x128xf32>
    %757 = arith.addf %752, %756 : vector<8x128xf32>
    %758 = arith.minimumf %663, %757 : vector<8x128xf32>
    %c0_306 = arith.constant 0 : index
    %c0_307 = arith.constant 0 : index
    %759 = vector.load %arg3[%c0_306, %c0_307] : memref<8x128xf32, #tpu.memory_space<vmem>>, vector<8x128xf32>
    tpu.vector_store %arg3[%c0_306, %c0_307], %758 {strides = array<i32>} : memref<8x128xf32, #tpu.memory_space<vmem>>, vector<8x128xf32>,
    %c7_i32_308 = arith.constant 7 : i32
    return
  }
  func.func @transform_0(%arg0: i32) -> (i32, i32) {
    %c0_i32 = arith.constant 0 : i32
    %c0_i32_0 = arith.constant 0 : i32
    %c0_i32_1 = arith.constant 0 : i32
    return %c0_i32, %c0_i32_0 : i32, i32
  }
  func.func @transform_1(%arg0: i32) -> (i32, i32) {
    %c0_i32 = arith.constant 0 : i32
    %c0_i32_0 = arith.constant 0 : i32
    %c0_i32_1 = arith.constant 0 : i32
    return %c0_i32, %c0_i32_0 : i32, i32
  }
}

</mosaic_0001>

<llo_original>
// kernel: tpu_custom_call.1
$region0: #{tpu_custom_call.1}
  #allocation0 [shape = 'u32[]', space=smem, size = 0x4, offset = 0x4, fixed_abs, tag = 'smem constant byte address 0x4 - core index']
  #allocation1 [shape = 'u32[144,128]{1,0:T(1,128)}', space=vmem, size = 0x12000, scoped, tag = 'internal scratch']
  #allocation2 [shape = 'f32[8,128]{1,0:T(8,128)}', space=vmem, size = 0x1000, scoped, tag = 'scratch operand']
  %s0 = inlined_call_operand.hbm [shape: f32[24,128], index: 0, kind: input, shape index: {}]
  %s1 = inlined_call_operand.hbm [shape: f32[8,128], index: 1, kind: output, shape index: {}]
  %s2 = sld [smem:[#allocation0]]
  $region18: #{tpu_custom_call.1} parent=0
    _
  %s4 = ssub.s32 1, %s2
  %s5 = scalar_select 0, %s4, %s2
  $region1: #{tpu_custom_call.1} parent=0
    #allocation3 [shape = 'u8[12288]{0}', space=vmem, size = 0x3000, scoped, tag = 'input window, operand 0, single buffered']
    #allocation4 [shape = 's32[1]{0}', space=sflag, size = 0x4, scoped, tag = 'scoped memory for tpu_custom_call.1']
    #allocation5 [shape = 's32[1]{0}', space=sflag, size = 0x4, scoped, tag = 'scoped memory for tpu_custom_call.1']
    #allocation6 [shape = 'u8[4096]{0}', space=vmem, size = 0x1000, scoped, tag = 'output window, operand 0, single buffered']
    %6 = vsyncpa [#allocation4], 0
    %7 = vsyncpa [#allocation5], 0
    // Predicated region
    $region2: #{tpu_custom_call.1} parent=1 // pred_check
      _
    $region3: #{tpu_custom_call.1} parent=1 // pred_check_branch
      %9 = sbr.rel (0) target = $region5
    $region4: #{tpu_custom_call.1} parent=1 // pred_region
      %s11 = ssub.s32 384, 384
      %12 = vsyncadd [#allocation4], %s11
      %s13 = sshll.u32 [#allocation3], 4
      %s14 = int_to_ptr.vmem [resolvable:$true] %s13
      %19 = dma.hbm_to_vmem [thread:$0]  %s0, 384, %s14, [#allocation4], 128, 128, 8
    $region5: #{tpu_custom_call.1} parent=1 // pred_fallthru
      _
    // Predicated region
    $region6: #{tpu_custom_call.1} parent=1 // pred_check
      _
    $region7: #{tpu_custom_call.1} parent=1 // pred_check_branch
      %21 = sbr.rel (0) target = $region9
    $region8: #{tpu_custom_call.1} parent=1 // pred_region
      %22 = dma.done [#allocation4], 384
    $region9: #{tpu_custom_call.1} parent=1 // pred_fallthru
      _
    %v23 = vlaneseq
    %v24 = vand.u32 %v23, 127
    %v25 = vlaneseq
    %v26 = vshrl.u32 %v25, 7
    %v27 = vmul.u32 %v26, 128
    %v28 = vadd.s32 %v27, %v24
    %vm29 = vcmp.lt.s32.totalorder %v28, 128
    %30 = vst [vmem:[#allocation6] sm:$0xff] 0.0
    %v31 = vld [vmem:[#allocation3] sm:$0x1]
    %vm32 = vcmp.eq.s32.totalorder %v24, 0
    %v33 = vsel %vm32, %v31, 0.0
    %vm34 = vcmask 1040384
    %v35 = vsel %vm34, %v33, 0.0
    %36 = vadd.xlane.f32.xlu0 %v35
    %v37 = vpop.xlane.xlu0 %36
    %v38 = vrot.slane %v37, 4
    %v39 = vadd.f32 %v37, %v38
    %v40 = vrot.slane %v39, 2
    %v41 = vadd.f32 %v39, %v40
    %v42 = vrot.slane %v41, 1
    %v43 = vadd.f32 %v41, %v42
    %s44 = vtos %v43
    %v45 = vld [vmem:[#allocation3 + $0x8] sm:$0x1]
    %v46 = vsel %vm32, %v45, 0.0
    %v47 = vsel %vm34, %v46, 0.0
    %48 = vadd.xlane.f32.xlu0 %v47
    %v49 = vpop.xlane.xlu0 %48
    %v50 = vrot.slane %v49, 4
    %v51 = vadd.f32 %v49, %v50
    %v52 = vrot.slane %v51, 2
    %v53 = vadd.f32 %v51, %v52
    %v54 = vrot.slane %v53, 1
    %v55 = vadd.f32 %v53, %v54
    %s56 = vtos %v55
    %v57 = vld [vmem:[#allocation3 + $0x10] sm:$0x1]
    %v58 = vsel %vm32, %v57, 0.0
    %v59 = vsel %vm34, %v58, 0.0
    %60 = vadd.xlane.f32.xlu0 %v59
    %v61 = vpop.xlane.xlu0 %60
    %v62 = vrot.slane %v61, 4
    %v63 = vadd.f32 %v61, %v62
    %v64 = vrot.slane %v63, 2
    %v65 = vadd.f32 %v63, %v64
    %v66 = vrot.slane %v65, 1
    %v67 = vadd.f32 %v65, %v66
    %s68 = vtos %v67
    %s69 = smul.f32 %s44, -2.0
    %vm70 = vcmp.eq.s32.totalorder %v24, 1
    %s71 = smul.f32 %s56, -2.0
    %vm72 = vcmp.eq.s32.totalorder %v24, 2
    %s73 = smul.f32 %s68, -2.0
    %vm74 = vcmp.eq.s32.totalorder %v24, 3
    %v75 = vsel %vm74, 1.0, 0.0
    %v76 = vstv %s73
    %v77 = vsel %vm72, %v76, %v75
    %v78 = vstv %s71
    %v79 = vsel %vm70, %v78, %v77
    %v80 = vstv %s69
    %v81 = vsel %vm32, %v80, %v79
    %82 = vst [vmem:[#allocation6] sm:$0x1] %v81
    %v83 = vld [vmem:[#allocation3] sm:$0xff]
    %v84 = vstv %s44
    %v85 = vsub.f32 %v83, %v84
    %v86 = vmul.f32 %v85, %v85
    %v87 = vld [vmem:[#allocation3 + $0x8] sm:$0xff]
    %v88 = vstv %s56
    %v89 = vsub.f32 %v87, %v88
    %v90 = vmul.f32 %v89, %v89
    %v91 = vadd.f32 %v86, %v90
    %v92 = vld [vmem:[#allocation3 + $0x10] sm:$0xff]
    %v93 = vstv %s68
    %v94 = vsub.f32 %v92, %v93
    %v95 = vmul.f32 %v94, %v94
    %v96 = vadd.f32 %v91, %v95
    %v97 = vsel %vm29, %v96, -inf
    %98 = vst [vmem:[#allocation2] sm:$0xff] %v97
    %v99 = vld [vmem:[#allocation2] sm:$0xff]
    %100 = vmax.xlane.f32.xlu0 %v99
    %v101 = vpop.xlane.xlu0 %100
    %v102 = vrot.slane %v101, 4
    %v103 = vmax.f32 %v101, %v102
    %v104 = vrot.slane %v103, 2
    %v105 = vmax.f32 %v103, %v104
    %v106 = vrot.slane %v105, 1
    %v107 = vmax.f32 %v105, %v106
    %s108 = vtos %v107
    %v109 = vstv %s108
    %vm110 = vcmp.eq.f32.partialorder %v101, %v109
    %v111 = vsel %vm110, %v26, 8
    %v112 = vrot.slane %v111, 4
    %vm113 = vcmp.lt.s32.totalorder %v111, %v112
    %v114 = vsel %vm113, %v111, %v112
    %v115 = vrot.slane %v114, 2
    %vm116 = vcmp.lt.s32.totalorder %v114, %v115
    %v117 = vsel %vm116, %v114, %v115
    %v118 = vrot.slane %v117, 1
    %vm119 = vcmp.lt.s32.totalorder %v117, %v118
    %v120 = vsel %vm119, %v117, %v118
    %s121 = vtos %v120
    %s122 = scalar_lea.vmem [#allocation2], %s121
    %v123 = vld [vmem:[%s122] sm:$0x1]
    %vm124 = vcmp.eq.f32.partialorder %v123, %v109
    %v125 = vsel %vm124, %v24, 128
    %v126 = vsel %vm34, %v125, 2147483647
    %v127 = vand.u32 %v126, 65535
    %v128 = vshra.s32 %v126, 16
    %v129 = vcvt.s32.f32 %v127
    %v130 = vcvt.s32.f32 %v128
    %131 = vmin.xlane.f32.xlu0 %v130
    %v132 = vpop.xlane.xlu0 %131
    %vm133 = vcmp.eq.f32.partialorder %v130, %v132
    %v134 = vsel %vm133, %v129, inf
    %135 = vmin.xlane.f32.xlu0 %v134
    %v136 = vpop.xlane.xlu0 %135
    %v137 = vcvt.f32.s32 %v136
    %v138 = vcvt.f32.s32 %v132
    %v139 = vshll.u32 %v138, 16
    %v140 = vadd.s32 %v139, %v137
    %v141 = vrot.slane %v140, 4
    %vm142 = vcmp.lt.s32.totalorder %v140, %v141
    %v143 = vsel %vm142, %v140, %v141
    %v144 = vrot.slane %v143, 2
    %vm145 = vcmp.lt.s32.totalorder %v143, %v144
    %v146 = vsel %vm145, %v143, %v144
    %v147 = vrot.slane %v146, 1
    %vm148 = vcmp.lt.s32.totalorder %v146, %v147
    %v149 = vsel %vm148, %v146, %v147
    %s150 = vtos %v149
    %s151 = scalar_lea.vmem [#allocation3], %s121
    %v152 = vld [vmem:[%s151] sm:$0x1]
    %v153 = vstv %s150
    %vm154 = vcmp.eq.s32.totalorder %v24, %v153
    %v155 = vsel %vm154, %v152, 0.0
    %v156 = vsel %vm34, %v155, 0.0
    %157 = vadd.xlane.f32.xlu0 %v156
    %v158 = vpop.xlane.xlu0 %157
    %v159 = vrot.slane %v158, 4
    %v160 = vadd.f32 %v158, %v159
    %v161 = vrot.slane %v160, 2
    %v162 = vadd.f32 %v160, %v161
    %v163 = vrot.slane %v162, 1
    %v164 = vadd.f32 %v162, %v163
    %s165 = vtos %v164
    %s166 = sadd.s32 %s121, 8
    %s167 = scalar_lea.vmem [#allocation3], %s166
    %v168 = vld [vmem:[%s167] sm:$0x1]
    %v169 = vsel %vm154, %v168, 0.0
    %v170 = vsel %vm34, %v169, 0.0
    %171 = vadd.xlane.f32.xlu0 %v170
    %v172 = vpop.xlane.xlu0 %171
    %v173 = vrot.slane %v172, 4
    %v174 = vadd.f32 %v172, %v173
    %v175 = vrot.slane %v174, 2
    %v176 = vadd.f32 %v174, %v175
    %v177 = vrot.slane %v176, 1
    %v178 = vadd.f32 %v176, %v177
    %s179 = vtos %v178
    %s180 = sadd.s32 %s121, 16
    %s181 = scalar_lea.vmem [#allocation3], %s180
    %v182 = vld [vmem:[%s181] sm:$0x1]
    %v183 = vsel %vm154, %v182, 0.0
    %v184 = vsel %vm34, %v183, 0.0
    %185 = vadd.xlane.f32.xlu0 %v184
    %v186 = vpop.xlane.xlu0 %185
    %v187 = vrot.slane %v186, 4
    %v188 = vadd.f32 %v186, %v187
    %v189 = vrot.slane %v188, 2
    %v190 = vadd.f32 %v188, %v189
    %v191 = vrot.slane %v190, 1
    %v192 = vadd.f32 %v190, %v191
    %s193 = vtos %v192
    %s194 = smul.f32 %s165, -2.0
    %s195 = smul.f32 %s179, -2.0
    %s196 = smul.f32 %s193, -2.0
    %v197 = vstv %s196
    %v198 = vsel %vm72, %v197, %v75
    %v199 = vstv %s195
    %v200 = vsel %vm70, %v199, %v198
    %v201 = vstv %s194
    %v202 = vsel %vm32, %v201, %v200
    %203 = vst [vmem:[#allocation6 + $0x1] sm:$0x1] %v202
    %v204 = vld [vmem:[#allocation3] sm:$0xff]
    %v205 = vstv %s165
    %v206 = vsub.f32 %v204, %v205
    %v207 = vmul.f32 %v206, %v206
    %v208 = vld [vmem:[#allocation3 + $0x8] sm:$0xff]
    %v209 = vstv %s179
    %v210 = vsub.f32 %v208, %v209
    %v211 = vmul.f32 %v210, %v210
    %v212 = vadd.f32 %v207, %v211
    %v213 = vld [vmem:[#allocation3 + $0x10] sm:$0xff]
    %v214 = vstv %s193
    %v215 = vsub.f32 %v213, %v214
    %v216 = vmul.f32 %v215, %v215
    %v217 = vadd.f32 %v212, %v216
    %v218 = vmin.f32 %v99, %v217
    %219 = vst [vmem:[#allocation2] sm:$0xff] %v218
    %v220 = vld [vmem:[#allocation2] sm:$0xff]
    %221 = vmax.xlane.f32.xlu0 %v220
    %v222 = vpop.xlane.xlu0 %221
    %v223 = vrot.slane %v222, 4
    %v224 = vmax.f32 %v222, %v223
    %v225 = vrot.slane %v224, 2
    %v226 = vmax.f32 %v224, %v225
    %v227 = vrot.slane %v226, 1
    %v228 = vmax.f32 %v226, %v227
    %s229 = vtos %v228
    %v230 = vstv %s229
    %vm231 = vcmp.eq.f32.partialorder %v222, %v230
    %v232 = vsel %vm231, %v26, 8
    %v233 = vrot.slane %v232, 4
    %vm234 = vcmp.lt.s32.totalorder %v232, %v233
    %v235 = vsel %vm234, %v232, %v233
    %v236 = vrot.slane %v235, 2
    %vm237 = vcmp.lt.s32.totalorder %v235, %v236
    %v238 = vsel %vm237, %v235, %v236
    %v239 = vrot.slane %v238, 1
    %vm240 = vcmp.lt.s32.totalorder %v238, %v239
    %v241 = vsel %vm240, %v238, %v239
    %s242 = vtos %v241
    %s243 = scalar_lea.vmem [#allocation2], %s242
    %v244 = vld [vmem:[%s243] sm:$0x1]
    %vm245 = vcmp.eq.f32.partialorder %v244, %v230
    %v246 = vsel %vm245, %v24, 128
    %v247 = vsel %vm34, %v246, 2147483647
    %v248 = vand.u32 %v247, 65535
    %v249 = vshra.s32 %v247, 16
    %v250 = vcvt.s32.f32 %v248
    %v251 = vcvt.s32.f32 %v249
    %252 = vmin.xlane.f32.xlu0 %v251
    %v253 = vpop.xlane.xlu0 %252
    %vm254 = vcmp.eq.f32.partialorder %v251, %v253
    %v255 = vsel %vm254, %v250, inf
    %256 = vmin.xlane.f32.xlu0 %v255
    %v257 = vpop.xlane.xlu0 %256
    %v258 = vcvt.f32.s32 %v257
    %v259 = vcvt.f32.s32 %v253
    %v260 = vshll.u32 %v259, 16
    %v261 = vadd.s32 %v260, %v258
    %v262 = vrot.slane %v261, 4
    %vm263 = vcmp.lt.s32.totalorder %v261, %v262
    %v264 = vsel %vm263, %v261, %v262
    %v265 = vrot.slane %v264, 2
    %vm266 = vcmp.lt.s32.totalorder %v264, %v265
    %v267 = vsel %vm266, %v264, %v265
    %v268 = vrot.slane %v267, 1
    %vm269 = vcmp.lt.s32.totalorder %v267, %v268
    %v270 = vsel %vm269, %v267, %v268
    %s271 = vtos %v270
    %s272 = scalar_lea.vmem [#allocation3], %s242
    %v273 = vld [vmem:[%s272] sm:$0x1]
    %v274 = vstv %s271
    %vm275 = vcmp.eq.s32.totalorder %v24, %v274
    %v276 = vsel %vm275, %v273, 0.0
    %v277 = vsel %vm34, %v276, 0.0
    %278 = vadd.xlane.f32.xlu0 %v277
    %v279 = vpop.xlane.xlu0 %278
    %v280 = vrot.slane %v279, 4
    %v281 = vadd.f32 %v279, %v280
    %v282 = vrot.slane %v281, 2
    %v283 = vadd.f32 %v281, %v282
    %v284 = vrot.slane %v283, 1
    %v285 = vadd.f32 %v283, %v284
    %s286 = vtos %v285
    %s287 = sadd.s32 %s242, 8
    %s288 = scalar_lea.vmem [#allocation3], %s287
    %v289 = vld [vmem:[%s288] sm:$0x1]
    %v290 = vsel %vm275, %v289, 0.0
    %v291 = vsel %vm34, %v290, 0.0
    %292 = vadd.xlane.f32.xlu0 %v291
    %v293 = vpop.xlane.xlu0 %292
    %v294 = vrot.slane %v293, 4
    %v295 = vadd.f32 %v293, %v294
    %v296 = vrot.slane %v295, 2
    %v297 = vadd.f32 %v295, %v296
    %v298 = vrot.slane %v297, 1
    %v299 = vadd.f32 %v297, %v298
    %s300 = vtos %v299
    %s301 = sadd.s32 %s242, 16
    %s302 = scalar_lea.vmem [#allocation3], %s301
    %v303 = vld [vmem:[%s302] sm:$0x1]
    %v304 = vsel %vm275, %v303, 0.0
    %v305 = vsel %vm34, %v304, 0.0
    %306 = vadd.xlane.f32.xlu0 %v305
    %v307 = vpop.xlane.xlu0 %306
    %v308 = vrot.slane %v307, 4
    %v309 = vadd.f32 %v307, %v308
    %v310 = vrot.slane %v309, 2
    %v311 = vadd.f32 %v309, %v310
    %v312 = vrot.slane %v311, 1
    %v313 = vadd.f32 %v311, %v312
    %s314 = vtos %v313
    %s315 = smul.f32 %s286, -2.0
    %s316 = smul.f32 %s300, -2.0
    %s317 = smul.f32 %s314, -2.0
    %v318 = vstv %s317
    %v319 = vsel %vm72, %v318, %v75
    %v320 = vstv %s316
    %v321 = vsel %vm70, %v320, %v319
    %v322 = vstv %s315
    %v323 = vsel %vm32, %v322, %v321
    %324 = vst [vmem:[#allocation6 + $0x2] sm:$0x1] %v323
    %v325 = vld [vmem:[#allocation3] sm:$0xff]
    %v326 = vstv %s286
    %v327 = vsub.f32 %v325, %v326
    %v328 = vmul.f32 %v327, %v327
    %v329 = vld [vmem:[#allocation3 + $0x8] sm:$0xff]
    %v330 = vstv %s300
    %v331 = vsub.f32 %v329, %v330
    %v332 = vmul.f32 %v331, %v331
    %v333 = vadd.f32 %v328, %v332
    %v334 = vld [vmem:[#allocation3 + $0x10] sm:$0xff]
    %v335 = vstv %s314
    %v336 = vsub.f32 %v334, %v335
    %v337 = vmul.f32 %v336, %v336
    %v338 = vadd.f32 %v333, %v337
    %v339 = vmin.f32 %v220, %v338
    %340 = vst [vmem:[#allocation2] sm:$0xff] %v339
    %v341 = vld [vmem:[#allocation2] sm:$0xff]
    %342 = vmax.xlane.f32.xlu0 %v341
    %v343 = vpop.xlane.xlu0 %342
    %v344 = vrot.slane %v343, 4
    %v345 = vmax.f32 %v343, %v344
    %v346 = vrot.slane %v345, 2
    %v347 = vmax.f32 %v345, %v346
    %v348 = vrot.slane %v347, 1
    %v349 = vmax.f32 %v347, %v348
    %s350 = vtos %v349
    %v351 = vstv %s350
    %vm352 = vcmp.eq.f32.partialorder %v343, %v351
    %v353 = vsel %vm352, %v26, 8
    %v354 = vrot.slane %v353, 4
    %vm355 = vcmp.lt.s32.totalorder %v353, %v354
    %v356 = vsel %vm355, %v353, %v354
    %v357 = vrot.slane %v356, 2
    %vm358 = vcmp.lt.s32.totalorder %v356, %v357
    %v359 = vsel %vm358, %v356, %v357
    %v360 = vrot.slane %v359, 1
    %vm361 = vcmp.lt.s32.totalorder %v359, %v360
    %v362 = vsel %vm361, %v359, %v360
    %s363 = vtos %v362
    %s364 = scalar_lea.vmem [#allocation2], %s363
    %v365 = vld [vmem:[%s364] sm:$0x1]
    %vm366 = vcmp.eq.f32.partialorder %v365, %v351
    %v367 = vsel %vm366, %v24, 128
    %v368 = vsel %vm34, %v367, 2147483647
    %v369 = vand.u32 %v368, 65535
    %v370 = vshra.s32 %v368, 16
    %v371 = vcvt.s32.f32 %v369
    %v372 = vcvt.s32.f32 %v370
    %373 = vmin.xlane.f32.xlu0 %v372
    %v374 = vpop.xlane.xlu0 %373
    %vm375 = vcmp.eq.f32.partialorder %v372, %v374
    %v376 = vsel %vm375, %v371, inf
    %377 = vmin.xlane.f32.xlu0 %v376
    %v378 = vpop.xlane.xlu0 %377
    %v379 = vcvt.f32.s32 %v378
    %v380 = vcvt.f32.s32 %v374
    %v381 = vshll.u32 %v380, 16
    %v382 = vadd.s32 %v381, %v379
    %v383 = vrot.slane %v382, 4
    %vm384 = vcmp.lt.s32.totalorder %v382, %v383
    %v385 = vsel %vm384, %v382, %v383
    %v386 = vrot.slane %v385, 2
    %vm387 = vcmp.lt.s32.totalorder %v385, %v386
    %v388 = vsel %vm387, %v385, %v386
    %v389 = vrot.slane %v388, 1
    %vm390 = vcmp.lt.s32.totalorder %v388, %v389
    %v391 = vsel %vm390, %v388, %v389
    %s392 = vtos %v391
    %s393 = scalar_lea.vmem [#allocation3], %s363
    %v394 = vld [vmem:[%s393] sm:$0x1]
    %v395 = vstv %s392
    %vm396 = vcmp.eq.s32.totalorder %v24, %v395
    %v397 = vsel %vm396, %v394, 0.0
    %v398 = vsel %vm34, %v397, 0.0
    %399 = vadd.xlane.f32.xlu0 %v398
    %v400 = vpop.xlane.xlu0 %399
    %v401 = vrot.slane %v400, 4
    %v402 = vadd.f32 %v400, %v401
    %v403 = vrot.slane %v402, 2
    %v404 = vadd.f32 %v402, %v403
    %v405 = vrot.slane %v404, 1
    %v406 = vadd.f32 %v404, %v405
    %s407 = vtos %v406
    %s408 = sadd.s32 %s363, 8
    %s409 = scalar_lea.vmem [#allocation3], %s408
    %v410 = vld [vmem:[%s409] sm:$0x1]
    %v411 = vsel %vm396, %v410, 0.0
    %v412 = vsel %vm34, %v411, 0.0
    %413 = vadd.xlane.f32.xlu0 %v412
    %v414 = vpop.xlane.xlu0 %413
    %v415 = vrot.slane %v414, 4
    %v416 = vadd.f32 %v414, %v415
    %v417 = vrot.slane %v416, 2
    %v418 = vadd.f32 %v416, %v417
    %v419 = vrot.slane %v418, 1
    %v420 = vadd.f32 %v418, %v419
    %s421 = vtos %v420
    %s422 = sadd.s32 %s363, 16
    %s423 = scalar_lea.vmem [#allocation3], %s422
    %v424 = vld [vmem:[%s423] sm:$0x1]
    %v425 = vsel %vm396, %v424, 0.0
    %v426 = vsel %vm34, %v425, 0.0
    %427 = vadd.xlane.f32.xlu0 %v426
    %v428 = vpop.xlane.xlu0 %427
    %v429 = vrot.slane %v428, 4
    %v430 = vadd.f32 %v428, %v429
    %v431 = vrot.slane %v430, 2
    %v432 = vadd.f32 %v430, %v431
    %v433 = vrot.slane %v432, 1
    %v434 = vadd.f32 %v432, %v433
    %s435 = vtos %v434
    %s436 = smul.f32 %s407, -2.0
    %s437 = smul.f32 %s421, -2.0
    %s438 = smul.f32 %s435, -2.0
    %v439 = vstv %s438
    %v440 = vsel %vm72, %v439, %v75
    %v441 = vstv %s437
    %v442 = vsel %vm70, %v441, %v440
    %v443 = vstv %s436
    %v444 = vsel %vm32, %v443, %v442
    %445 = vst [vmem:[#allocation6 + $0x3] sm:$0x1] %v444
    %v446 = vld [vmem:[#allocation3] sm:$0xff]
    %v447 = vstv %s407
    %v448 = vsub.f32 %v446, %v447
    %v449 = vmul.f32 %v448, %v448
    %v450 = vld [vmem:[#allocation3 + $0x8] sm:$0xff]
    %v451 = vstv %s421
    %v452 = vsub.f32 %v450, %v451
    %v453 = vmul.f32 %v452, %v452
    %v454 = vadd.f32 %v449, %v453
    %v455 = vld [vmem:[#allocation3 + $0x10] sm:$0xff]
    %v456 = vstv %s435
    %v457 = vsub.f32 %v455, %v456
    %v458 = vmul.f32 %v457, %v457
    %v459 = vadd.f32 %v454, %v458
    %v460 = vmin.f32 %v341, %v459
    %461 = vst [vmem:[#allocation2] sm:$0xff] %v460
    %v462 = vld [vmem:[#allocation2] sm:$0xff]
    %463 = vmax.xlane.f32.xlu0 %v462
    %v464 = vpop.xlane.xlu0 %463
    %v465 = vrot.slane %v464, 4
    %v466 = vmax.f32 %v464, %v465
    %v467 = vrot.slane %v466, 2
    %v468 = vmax.f32 %v466, %v467
    %v469 = vrot.slane %v468, 1
    %v470 = vmax.f32 %v468, %v469
    %s471 = vtos %v470
    %v472 = vstv %s471
    %vm473 = vcmp.eq.f32.partialorder %v464, %v472
    %v474 = vsel %vm473, %v26, 8
    %v475 = vrot.slane %v474, 4
    %vm476 = vcmp.lt.s32.totalorder %v474, %v475
    %v477 = vsel %vm476, %v474, %v475
    %v478 = vrot.slane %v477, 2
    %vm479 = vcmp.lt.s32.totalorder %v477, %v478
    %v480 = vsel %vm479, %v477, %v478
    %v481 = vrot.slane %v480, 1
    %vm482 = vcmp.lt.s32.totalorder %v480, %v481
    %v483 = vsel %vm482, %v480, %v481
    %s484 = vtos %v483
    %s485 = scalar_lea.vmem [#allocation2], %s484
    %v486 = vld [vmem:[%s485] sm:$0x1]
    %vm487 = vcmp.eq.f32.partialorder %v486, %v472
    %v488 = vsel %vm487, %v24, 128
    %v489 = vsel %vm34, %v488, 2147483647
    %v490 = vand.u32 %v489, 65535
    %v491 = vshra.s32 %v489, 16
    %v492 = vcvt.s32.f32 %v490
    %v493 = vcvt.s32.f32 %v491
    %494 = vmin.xlane.f32.xlu0 %v493
    %v495 = vpop.xlane.xlu0 %494
    %vm496 = vcmp.eq.f32.partialorder %v493, %v495
    %v497 = vsel %vm496, %v492, inf
    %498 = vmin.xlane.f32.xlu0 %v497
    %v499 = vpop.xlane.xlu0 %498
    %v500 = vcvt.f32.s32 %v499
    %v501 = vcvt.f32.s32 %v495
    %v502 = vshll.u32 %v501, 16
    %v503 = vadd.s32 %v502, %v500
    %v504 = vrot.slane %v503, 4
    %vm505 = vcmp.lt.s32.totalorder %v503, %v504
    %v506 = vsel %vm505, %v503, %v504
    %v507 = vrot.slane %v506, 2
    %vm508 = vcmp.lt.s32.totalorder %v506, %v507
    %v509 = vsel %vm508, %v506, %v507
    %v510 = vrot.slane %v509, 1
    %vm511 = vcmp.lt.s32.totalorder %v509, %v510
    %v512 = vsel %vm511, %v509, %v510
    %s513 = vtos %v512
    %s514 = scalar_lea.vmem [#allocation3], %s484
    %v515 = vld [vmem:[%s514] sm:$0x1]
    %v516 = vstv %s513
    %vm517 = vcmp.eq.s32.totalorder %v24, %v516
    %v518 = vsel %vm517, %v515, 0.0
    %v519 = vsel %vm34, %v518, 0.0
    %520 = vadd.xlane.f32.xlu0 %v519
    %v521 = vpop.xlane.xlu0 %520
    %v522 = vrot.slane %v521, 4
    %v523 = vadd.f32 %v521, %v522
    %v524 = vrot.slane %v523, 2
    %v525 = vadd.f32 %v523, %v524
    %v526 = vrot.slane %v525, 1
    %v527 = vadd.f32 %v525, %v526
    %s528 = vtos %v527
    %s529 = sadd.s32 %s484, 8
    %s530 = scalar_lea.vmem [#allocation3], %s529
    %v531 = vld [vmem:[%s530] sm:$0x1]
    %v532 = vsel %vm517, %v531, 0.0
    %v533 = vsel %vm34, %v532, 0.0
    %534 = vadd.xlane.f32.xlu0 %v533
    %v535 = vpop.xlane.xlu0 %534
    %v536 = vrot.slane %v535, 4
    %v537 = vadd.f32 %v535, %v536
    %v538 = vrot.slane %v537, 2
    %v539 = vadd.f32 %v537, %v538
    %v540 = vrot.slane %v539, 1
    %v541 = vadd.f32 %v539, %v540
    %s542 = vtos %v541
    %s543 = sadd.s32 %s484, 16
    %s544 = scalar_lea.vmem [#allocation3], %s543
    %v545 = vld [vmem:[%s544] sm:$0x1]
    %v546 = vsel %vm517, %v545, 0.0
    %v547 = vsel %vm34, %v546, 0.0
    %548 = vadd.xlane.f32.xlu0 %v547
    %v549 = vpop.xlane.xlu0 %548
    %v550 = vrot.slane %v549, 4
    %v551 = vadd.f32 %v549, %v550
    %v552 = vrot.slane %v551, 2
    %v553 = vadd.f32 %v551, %v552
    %v554 = vrot.slane %v553, 1
    %v555 = vadd.f32 %v553, %v554
    %s556 = vtos %v555
    %s557 = smul.f32 %s528, -2.0
    %s558 = smul.f32 %s542, -2.0
    %s559 = smul.f32 %s556, -2.0
    %v560 = vstv %s559
    %v561 = vsel %vm72, %v560, %v75
    %v562 = vstv %s558
    %v563 = vsel %vm70, %v562, %v561
    %v564 = vstv %s557
    %v565 = vsel %vm32, %v564, %v563
    %566 = vst [vmem:[#allocation6 + $0x4] sm:$0x1] %v565
    %v567 = vld [vmem:[#allocation3] sm:$0xff]
    %v568 = vstv %s528
    %v569 = vsub.f32 %v567, %v568
    %v570 = vmul.f32 %v569, %v569
    %v571 = vld [vmem:[#allocation3 + $0x8] sm:$0xff]
    %v572 = vstv %s542
    %v573 = vsub.f32 %v571, %v572
    %v574 = vmul.f32 %v573, %v573
    %v575 = vadd.f32 %v570, %v574
    %v576 = vld [vmem:[#allocation3 + $0x10] sm:$0xff]
    %v577 = vstv %s556
    %v578 = vsub.f32 %v576, %v577
    %v579 = vmul.f32 %v578, %v578
    %v580 = vadd.f32 %v575, %v579
    %v581 = vmin.f32 %v462, %v580
    %582 = vst [vmem:[#allocation2] sm:$0xff] %v581
    %v583 = vld [vmem:[#allocation2] sm:$0xff]
    %584 = vmax.xlane.f32.xlu0 %v583
    %v585 = vpop.xlane.xlu0 %584
    %v586 = vrot.slane %v585, 4
    %v587 = vmax.f32 %v585, %v586
    %v588 = vrot.slane %v587, 2
    %v589 = vmax.f32 %v587, %v588
    %v590 = vrot.slane %v589, 1
    %v591 = vmax.f32 %v589, %v590
    %s592 = vtos %v591
    %v593 = vstv %s592
    %vm594 = vcmp.eq.f32.partialorder %v585, %v593
    %v595 = vsel %vm594, %v26, 8
    %v596 = vrot.slane %v595, 4
    %vm597 = vcmp.lt.s32.totalorder %v595, %v596
    %v598 = vsel %vm597, %v595, %v596
    %v599 = vrot.slane %v598, 2
    %vm600 = vcmp.lt.s32.totalorder %v598, %v599
    %v601 = vsel %vm600, %v598, %v599
    %v602 = vrot.slane %v601, 1
    %vm603 = vcmp.lt.s32.totalorder %v601, %v602
    %v604 = vsel %vm603, %v601, %v602
    %s605 = vtos %v604
    %s606 = scalar_lea.vmem [#allocation2], %s605
    %v607 = vld [vmem:[%s606] sm:$0x1]
    %vm608 = vcmp.eq.f32.partialorder %v607, %v593
    %v609 = vsel %vm608, %v24, 128
    %v610 = vsel %vm34, %v609, 2147483647
    %v611 = vand.u32 %v610, 65535
    %v612 = vshra.s32 %v610, 16
    %v613 = vcvt.s32.f32 %v611
    %v614 = vcvt.s32.f32 %v612
    %615 = vmin.xlane.f32.xlu0 %v614
    %v616 = vpop.xlane.xlu0 %615
    %vm617 = vcmp.eq.f32.partialorder %v614, %v616
    %v618 = vsel %vm617, %v613, inf
    %619 = vmin.xlane.f32.xlu0 %v618
    %v620 = vpop.xlane.xlu0 %619
    %v621 = vcvt.f32.s32 %v620
    %v622 = vcvt.f32.s32 %v616
    %v623 = vshll.u32 %v622, 16
    %v624 = vadd.s32 %v623, %v621
    %v625 = vrot.slane %v624, 4
    %vm626 = vcmp.lt.s32.totalorder %v624, %v625
    %v627 = vsel %vm626, %v624, %v625
    %v628 = vrot.slane %v627, 2
    %vm629 = vcmp.lt.s32.totalorder %v627, %v628
    %v630 = vsel %vm629, %v627, %v628
    %v631 = vrot.slane %v630, 1
    %vm632 = vcmp.lt.s32.totalorder %v630, %v631
    %v633 = vsel %vm632, %v630, %v631
    %s634 = vtos %v633
    %s635 = scalar_lea.vmem [#allocation3], %s605
    %v636 = vld [vmem:[%s635] sm:$0x1]
    %v637 = vstv %s634
    %vm638 = vcmp.eq.s32.totalorder %v24, %v637
    %v639 = vsel %vm638, %v636, 0.0
    %v640 = vsel %vm34, %v639, 0.0
    %641 = vadd.xlane.f32.xlu0 %v640
    %v642 = vpop.xlane.xlu0 %641
    %v643 = vrot.slane %v642, 4
    %v644 = vadd.f32 %v642, %v643
    %v645 = vrot.slane %v644, 2
    %v646 = vadd.f32 %v644, %v645
    %v647 = vrot.slane %v646, 1
    %v648 = vadd.f32 %v646, %v647
    %s649 = vtos %v648
    %s650 = sadd.s32 %s605, 8
    %s651 = scalar_lea.vmem [#allocation3], %s650
    %v652 = vld [vmem:[%s651] sm:$0x1]
    %v653 = vsel %vm638, %v652, 0.0
    %v654 = vsel %vm34, %v653, 0.0
    %655 = vadd.xlane.f32.xlu0 %v654
    %v656 = vpop.xlane.xlu0 %655
    %v657 = vrot.slane %v656, 4
    %v658 = vadd.f32 %v656, %v657
    %v659 = vrot.slane %v658, 2
    %v660 = vadd.f32 %v658, %v659
    %v661 = vrot.slane %v660, 1
    %v662 = vadd.f32 %v660, %v661
    %s663 = vtos %v662
    %s664 = sadd.s32 %s605, 16
    %s665 = scalar_lea.vmem [#allocation3], %s664
    %v666 = vld [vmem:[%s665] sm:$0x1]
    %v667 = vsel %vm638, %v666, 0.0
    %v668 = vsel %vm34, %v667, 0.0
    %669 = vadd.xlane.f32.xlu0 %v668
    %v670 = vpop.xlane.xlu0 %669
    %v671 = vrot.slane %v670, 4
    %v672 = vadd.f32 %v670, %v671
    %v673 = vrot.slane %v672, 2
    %v674 = vadd.f32 %v672, %v673
    %v675 = vrot.slane %v674, 1
    %v676 = vadd.f32 %v674, %v675
    %s677 = vtos %v676
    %s678 = smul.f32 %s649, -2.0
    %s679 = smul.f32 %s663, -2.0
    %s680 = smul.f32 %s677, -2.0
    %v681 = vstv %s680
    %v682 = vsel %vm72, %v681, %v75
    %v683 = vstv %s679
    %v684 = vsel %vm70, %v683, %v682
    %v685 = vstv %s678
    %v686 = vsel %vm32, %v685, %v684
    %687 = vst [vmem:[#allocation6 + $0x5] sm:$0x1] %v686
    %v688 = vld [vmem:[#allocation3] sm:$0xff]
    %v689 = vstv %s649
    %v690 = vsub.f32 %v688, %v689
    %v691 = vmul.f32 %v690, %v690
    %v692 = vld [vmem:[#allocation3 + $0x8] sm:$0xff]
    %v693 = vstv %s663
    %v694 = vsub.f32 %v692, %v693
    %v695 = vmul.f32 %v694, %v694
    %v696 = vadd.f32 %v691, %v695
    %v697 = vld [vmem:[#allocation3 + $0x10] sm:$0xff]
    %v698 = vstv %s677
    %v699 = vsub.f32 %v697, %v698
    %v700 = vmul.f32 %v699, %v699
    %v701 = vadd.f32 %v696, %v700
    %v702 = vmin.f32 %v583, %v701
    %703 = vst [vmem:[#allocation2] sm:$0xff] %v702
    %v704 = vld [vmem:[#allocation2] sm:$0xff]
    %705 = vmax.xlane.f32.xlu0 %v704
    %v706 = vpop.xlane.xlu0 %705
    %v707 = vrot.slane %v706, 4
    %v708 = vmax.f32 %v706, %v707
    %v709 = vrot.slane %v708, 2
    %v710 = vmax.f32 %v708, %v709
    %v711 = vrot.slane %v710, 1
    %v712 = vmax.f32 %v710, %v711
    %s713 = vtos %v712
    %v714 = vstv %s713
    %vm715 = vcmp.eq.f32.partialorder %v706, %v714
    %v716 = vsel %vm715, %v26, 8
    %v717 = vrot.slane %v716, 4
    %vm718 = vcmp.lt.s32.totalorder %v716, %v717
    %v719 = vsel %vm718, %v716, %v717
    %v720 = vrot.slane %v719, 2
    %vm721 = vcmp.lt.s32.totalorder %v719, %v720
    %v722 = vsel %vm721, %v719, %v720
    %v723 = vrot.slane %v722, 1
    %vm724 = vcmp.lt.s32.totalorder %v722, %v723
    %v725 = vsel %vm724, %v722, %v723
    %s726 = vtos %v725
    %s727 = scalar_lea.vmem [#allocation2], %s726
    %v728 = vld [vmem:[%s727] sm:$0x1]
    %vm729 = vcmp.eq.f32.partialorder %v728, %v714
    %v730 = vsel %vm729, %v24, 128
    %v731 = vsel %vm34, %v730, 2147483647
    %v732 = vand.u32 %v731, 65535
    %v733 = vshra.s32 %v731, 16
    %v734 = vcvt.s32.f32 %v732
    %v735 = vcvt.s32.f32 %v733
    %736 = vmin.xlane.f32.xlu0 %v735
    %v737 = vpop.xlane.xlu0 %736
    %vm738 = vcmp.eq.f32.partialorder %v735, %v737
    %v739 = vsel %vm738, %v734, inf
    %740 = vmin.xlane.f32.xlu0 %v739
    %v741 = vpop.xlane.xlu0 %740
    %v742 = vcvt.f32.s32 %v741
    %v743 = vcvt.f32.s32 %v737
    %v744 = vshll.u32 %v743, 16
    %v745 = vadd.s32 %v744, %v742
    %v746 = vrot.slane %v745, 4
    %vm747 = vcmp.lt.s32.totalorder %v745, %v746
    %v748 = vsel %vm747, %v745, %v746
    %v749 = vrot.slane %v748, 2
    %vm750 = vcmp.lt.s32.totalorder %v748, %v749
    %v751 = vsel %vm750, %v748, %v749
    %v752 = vrot.slane %v751, 1
    %vm753 = vcmp.lt.s32.totalorder %v751, %v752
    %v754 = vsel %vm753, %v751, %v752
    %s755 = vtos %v754
    %s756 = scalar_lea.vmem [#allocation3], %s726
    %v757 = vld [vmem:[%s756] sm:$0x1]
    %v758 = vstv %s755
    %vm759 = vcmp.eq.s32.totalorder %v24, %v758
    %v760 = vsel %vm759, %v757, 0.0
    %v761 = vsel %vm34, %v760, 0.0
    %762 = vadd.xlane.f32.xlu0 %v761
    %v763 = vpop.xlane.xlu0 %762
    %v764 = vrot.slane %v763, 4
    %v765 = vadd.f32 %v763, %v764
    %v766 = vrot.slane %v765, 2
    %v767 = vadd.f32 %v765, %v766
    %v768 = vrot.slane %v767, 1
    %v769 = vadd.f32 %v767, %v768
    %s770 = vtos %v769
    %s771 = sadd.s32 %s726, 8
    %s772 = scalar_lea.vmem [#allocation3], %s771
    %v773 = vld [vmem:[%s772] sm:$0x1]
    %v774 = vsel %vm759, %v773, 0.0
    %v775 = vsel %vm34, %v774, 0.0
    %776 = vadd.xlane.f32.xlu0 %v775
    %v777 = vpop.xlane.xlu0 %776
    %v778 = vrot.slane %v777, 4
    %v779 = vadd.f32 %v777, %v778
    %v780 = vrot.slane %v779, 2
    %v781 = vadd.f32 %v779, %v780
    %v782 = vrot.slane %v781, 1
    %v783 = vadd.f32 %v781, %v782
    %s784 = vtos %v783
    %s785 = sadd.s32 %s726, 16
    %s786 = scalar_lea.vmem [#allocation3], %s785
    %v787 = vld [vmem:[%s786] sm:$0x1]
    %v788 = vsel %vm759, %v787, 0.0
    %v789 = vsel %vm34, %v788, 0.0
    %790 = vadd.xlane.f32.xlu0 %v789
    %v791 = vpop.xlane.xlu0 %790
    %v792 = vrot.slane %v791, 4
    %v793 = vadd.f32 %v791, %v792
    %v794 = vrot.slane %v793, 2
    %v795 = vadd.f32 %v793, %v794
    %v796 = vrot.slane %v795, 1
    %v797 = vadd.f32 %v795, %v796
    %s798 = vtos %v797
    %s799 = smul.f32 %s770, -2.0
    %s800 = smul.f32 %s784, -2.0
    %s801 = smul.f32 %s798, -2.0
    %v802 = vstv %s801
    %v803 = vsel %vm72, %v802, %v75
    %v804 = vstv %s800
    %v805 = vsel %vm70, %v804, %v803
    %v806 = vstv %s799
    %v807 = vsel %vm32, %v806, %v805
    %808 = vst [vmem:[#allocation6 + $0x6] sm:$0x1] %v807
    %v809 = vld [vmem:[#allocation3] sm:$0xff]
    %v810 = vstv %s770
    %v811 = vsub.f32 %v809, %v810
    %v812 = vmul.f32 %v811, %v811
    %v813 = vld [vmem:[#allocation3 + $0x8] sm:$0xff]
    %v814 = vstv %s784
    %v815 = vsub.f32 %v813, %v814
    %v816 = vmul.f32 %v815, %v815
    %v817 = vadd.f32 %v812, %v816
    %v818 = vld [vmem:[#allocation3 + $0x10] sm:$0xff]
    %v819 = vstv %s798
    %v820 = vsub.f32 %v818, %v819
    %v821 = vmul.f32 %v820, %v820
    %v822 = vadd.f32 %v817, %v821
    %v823 = vmin.f32 %v704, %v822
    %824 = vst [vmem:[#allocation2] sm:$0xff] %v823
    %v825 = vld [vmem:[#allocation2] sm:$0xff]
    %826 = vmax.xlane.f32.xlu0 %v825
    %v827 = vpop.xlane.xlu0 %826
    %v828 = vrot.slane %v827, 4
    %v829 = vmax.f32 %v827, %v828
    %v830 = vrot.slane %v829, 2
    %v831 = vmax.f32 %v829, %v830
    %v832 = vrot.slane %v831, 1
    %v833 = vmax.f32 %v831, %v832
    %s834 = vtos %v833
    %v835 = vstv %s834
    %vm836 = vcmp.eq.f32.partialorder %v827, %v835
    %v837 = vsel %vm836, %v26, 8
    %v838 = vrot.slane %v837, 4
    %vm839 = vcmp.lt.s32.totalorder %v837, %v838
    %v840 = vsel %vm839, %v837, %v838
    %v841 = vrot.slane %v840, 2
    %vm842 = vcmp.lt.s32.totalorder %v840, %v841
    %v843 = vsel %vm842, %v840, %v841
    %v844 = vrot.slane %v843, 1
    %vm845 = vcmp.lt.s32.totalorder %v843, %v844
    %v846 = vsel %vm845, %v843, %v844
    %s847 = vtos %v846
    %s848 = scalar_lea.vmem [#allocation2], %s847
    %v849 = vld [vmem:[%s848] sm:$0x1]
    %vm850 = vcmp.eq.f32.partialorder %v849, %v835
    %v851 = vsel %vm850, %v24, 128
    %v852 = vsel %vm34, %v851, 2147483647
    %v853 = vand.u32 %v852, 65535
    %v854 = vshra.s32 %v852, 16
    %v855 = vcvt.s32.f32 %v853
    %v856 = vcvt.s32.f32 %v854
    %857 = vmin.xlane.f32.xlu0 %v856
    %v858 = vpop.xlane.xlu0 %857
    %vm859 = vcmp.eq.f32.partialorder %v856, %v858
    %v860 = vsel %vm859, %v855, inf
    %861 = vmin.xlane.f32.xlu0 %v860
    %v862 = vpop.xlane.xlu0 %861
    %v863 = vcvt.f32.s32 %v862
    %v864 = vcvt.f32.s32 %v858
    %v865 = vshll.u32 %v864, 16
    %v866 = vadd.s32 %v865, %v863
    %v867 = vrot.slane %v866, 4
    %vm868 = vcmp.lt.s32.totalorder %v866, %v867
    %v869 = vsel %vm868, %v866, %v867
    %v870 = vrot.slane %v869, 2
    %vm871 = vcmp.lt.s32.totalorder %v869, %v870
    %v872 = vsel %vm871, %v869, %v870
    %v873 = vrot.slane %v872, 1
    %vm874 = vcmp.lt.s32.totalorder %v872, %v873
    %v875 = vsel %vm874, %v872, %v873
    %s876 = vtos %v875
    %s877 = scalar_lea.vmem [#allocation3], %s847
    %v878 = vld [vmem:[%s877] sm:$0x1]
    %v879 = vstv %s876
    %vm880 = vcmp.eq.s32.totalorder %v24, %v879
    %v881 = vsel %vm880, %v878, 0.0
    %v882 = vsel %vm34, %v881, 0.0
    %883 = vadd.xlane.f32.xlu0 %v882
    %v884 = vpop.xlane.xlu0 %883
    %v885 = vrot.slane %v884, 4
    %v886 = vadd.f32 %v884, %v885
    %v887 = vrot.slane %v886, 2
    %v888 = vadd.f32 %v886, %v887
    %v889 = vrot.slane %v888, 1
    %v890 = vadd.f32 %v888, %v889
    %s891 = vtos %v890
    %s892 = sadd.s32 %s847, 8
    %s893 = scalar_lea.vmem [#allocation3], %s892
    %v894 = vld [vmem:[%s893] sm:$0x1]
    %v895 = vsel %vm880, %v894, 0.0
    %v896 = vsel %vm34, %v895, 0.0
    %897 = vadd.xlane.f32.xlu0 %v896
    %v898 = vpop.xlane.xlu0 %897
    %v899 = vrot.slane %v898, 4
    %v900 = vadd.f32 %v898, %v899
    %v901 = vrot.slane %v900, 2
    %v902 = vadd.f32 %v900, %v901
    %v903 = vrot.slane %v902, 1
    %v904 = vadd.f32 %v902, %v903
    %s905 = vtos %v904
    %s906 = sadd.s32 %s847, 16
    %s907 = scalar_lea.vmem [#allocation3], %s906
    %v908 = vld [vmem:[%s907] sm:$0x1]
    %v909 = vsel %vm880, %v908, 0.0
    %v910 = vsel %vm34, %v909, 0.0
    %911 = vadd.xlane.f32.xlu0 %v910
    %v912 = vpop.xlane.xlu0 %911
    %v913 = vrot.slane %v912, 4
    %v914 = vadd.f32 %v912, %v913
    %v915 = vrot.slane %v914, 2
    %v916 = vadd.f32 %v914, %v915
    %v917 = vrot.slane %v916, 1
    %v918 = vadd.f32 %v916, %v917
    %s919 = vtos %v918
    %s920 = smul.f32 %s891, -2.0
    %s921 = smul.f32 %s905, -2.0
    %s922 = smul.f32 %s919, -2.0
    %v923 = vstv %s922
    %v924 = vsel %vm72, %v923, %v75
    %v925 = vstv %s921
    %v926 = vsel %vm70, %v925, %v924
    %v927 = vstv %s920
    %v928 = vsel %vm32, %v927, %v926
    %929 = vst [vmem:[#allocation6 + $0x7] sm:$0x1] %v928
    %v930 = vld [vmem:[#allocation3] sm:$0xff]
    %v931 = vstv %s891
    %v932 = vsub.f32 %v930, %v931
    %v933 = vmul.f32 %v932, %v932
    %v934 = vld [vmem:[#allocation3 + $0x8] sm:$0xff]
    %v935 = vstv %s905
    %v936 = vsub.f32 %v934, %v935
    %v937 = vmul.f32 %v936, %v936
    %v938 = vadd.f32 %v933, %v937
    %v939 = vld [vmem:[#allocation3 + $0x10] sm:$0xff]
    %v940 = vstv %s919
    %v941 = vsub.f32 %v939, %v940
    %v942 = vmul.f32 %v941, %v941
    %v943 = vadd.f32 %v938, %v942
    %v944 = vmin.f32 %v825, %v943
    %945 = vst [vmem:[#allocation2] sm:$0xff] %v944
    // Predicated region
    $region10: #{tpu_custom_call.1} parent=1 // pred_check
      _
    $region11: #{tpu_custom_call.1} parent=1 // pred_check_branch
      %947 = sbr.rel (0) target = $region13
    $region12: #{tpu_custom_call.1} parent=1 // pred_region
      %s949 = ssub.s32 128, 128
      %950 = vsyncadd [#allocation5], %s949
      %s952 = sshll.u32 [#allocation6], 4
      %s953 = int_to_ptr.vmem [resolvable:$true] %s952
      %955 = dma.vmem_to_hbm [thread:$0]  %s953, 128, %s1, [#allocation5]
    $region13: #{tpu_custom_call.1} parent=1 // pred_fallthru
      _
    // Predicated region
    $region14: #{tpu_custom_call.1} parent=1 // pred_check
      _
    $region15: #{tpu_custom_call.1} parent=1 // pred_check_branch
      %957 = sbr.rel (0) target = $region17
    $region16: #{tpu_custom_call.1} parent=1 // pred_region
      %958 = dma.done [#allocation5], 128
    $region17: #{tpu_custom_call.1} parent=1 // pred_fallthru
      _
    %959 = vsyncpa [#allocation4], 1
    %960 = vsyncpa [#allocation5], 1

</llo_original>
